<compile_context>
chip_gen: v6e
topology: v6e:2x2x1
jax: 0.10.0
libtpu: 0.0.40
codegen_flags: <defaults>
</compile_context>

<pallas_src>
import math

import jax
import jax.numpy as jnp
from jax.experimental import pallas as pl
from jax.experimental.pallas import tpu as pltpu


def _make_attention_kernel(batch: int, seq: int, n_heads: int, d_head: int,
                           d_model: int, compute_dtype):
    HD = n_heads * d_head
    neg_big = float(jnp.finfo(jnp.float32).min)

    def kernel(x_ref, wqkv_ref, bqkv_ref, wo_ref, bo_ref, out_ref, kv_ref):
        # x_ref:    (B*S, M)      batch collapsed into sublanes, compute_dtype
        # wqkv_ref: (M, 3*H*D)    fused [W_Q*scale | W_K | W_V], compute_dtype
        # bqkv_ref: (1, 3*H*D)    fused [b_Q*scale | b_K | b_V], f32
        # wo_ref:   (H*D, M)      W_O flattened head-major, compute_dtype
        # bo_ref:   (1, M)        f32
        # out_ref:  (B*S, M)
        # kv_ref:   (B, 2, S, H*D) lane-dense K/V cache
        x = x_ref[...]

        # --- fused QKV projection: one MXU matmul for all heads & all of Q/K/V ---
        qkv = jnp.dot(x, wqkv_ref[...],
                      preferred_element_type=jnp.float32) + bqkv_ref[...]
        q = qkv[:, :HD]                       # scale already folded into W_Q / b_Q
        k = qkv[:, HD:2 * HD]
        v = qkv[:, 2 * HD:3 * HD]

        # bf16 copies for the MXU score / PV matmuls (no-op when compute_dtype=f32)
        q_c = q.astype(compute_dtype)
        k_c = k.astype(compute_dtype)
        v_c = v.astype(compute_dtype)

        # causal mask: True strictly above the diagonal (key_pos > query_pos)
        q_idx = jax.lax.broadcasted_iota(jnp.int32, (seq, seq), 0)
        k_idx = jax.lax.broadcasted_iota(jnp.int32, (seq, seq), 1)
        causal_mask = k_idx > q_idx

        z_rows = []
        for b in range(batch):                         # static; B is tiny here
            rows = slice(b * seq, (b + 1) * seq)

            # --- lane-dense KV-cache writeback: whole (S, H*D) rows, f32 values ---
            kv_ref[b, 0] = k[rows].astype(kv_ref.dtype)
            kv_ref[b, 1] = v[rows].astype(kv_ref.dtype)

            # --- per-head attention on static lane slices of the fused Q/K/V ---
            z_heads = []
            for h in range(n_heads):                   # static; H is tiny here
                cols = slice(h * d_head, (h + 1) * d_head)
                qh = q_c[rows, cols]
                kh = k_c[rows, cols]
                vh = v_c[rows, cols]
                s = jnp.dot(qh, kh.T, preferred_element_type=jnp.float32)   # (S, S)
                s = jnp.where(causal_mask, neg_big, s)
                m = jnp.max(s, axis=-1, keepdims=True)
                e = jnp.exp(s - m)
                denom = jnp.sum(e, axis=-1, keepdims=True)
                p = e * pl.reciprocal(denom, approx=True)                   # EUP divide
                z_heads.append(jnp.dot(p.astype(compute_dtype), vh,
                                       preferred_element_type=jnp.float32))
            z_rows.append(jnp.concatenate(z_heads, axis=-1))                # (S, HD)

        # --- fused output projection: single matmul + single bias add ---
        z = jnp.concatenate(z_rows, axis=0).astype(compute_dtype)           # (B*S, HD)
        out = jnp.dot(z, wo_ref[...], preferred_element_type=jnp.float32) + bo_ref[...]
        out_ref[...] = out.astype(out_ref.dtype)

    return kernel


def prepare_attention_params(wq, wk, wv, wo, bq, bk, bv, bo,
                             compute_dtype=jnp.bfloat16):
    """One-time (offline) construction of fused, head-major weight layouts.
    Keeps the transpose/concat traffic out of the per-call hot path."""
    H, M, D = wq.shape
    HD = H * D
    scale = 1.0 / math.sqrt(D)

    # (H, M, D) -> (M, H*D), columns ordered head-major (h*D + d)
    def head_major_cols(w):
        return jnp.transpose(w, (1, 0, 2)).reshape(M, HD)

    w_qkv = jnp.concatenate(
        [head_major_cols(wq) * scale,          # fold 1/sqrt(d_head) into W_Q
         head_major_cols(wk),
         head_major_cols(wv)], axis=1).astype(compute_dtype)           # (M, 3*H*D)
    b_qkv = jnp.concatenate(
        [bq.reshape(HD) * scale, bk.reshape(HD), bv.reshape(HD)]
    ).reshape(1, 3 * HD).astype(jnp.float32)
    w_o = wo.reshape(HD, M).astype(compute_dtype)   # head-major rows, matches z columns
    b_o = bo.reshape(1, M).astype(jnp.float32)

    return dict(w_qkv=w_qkv, b_qkv=b_qkv, w_o=w_o, b_o=b_o,
                n_heads=H, d_head=D, d_model=M, compute_dtype=compute_dtype)


def attention_forward(x, params):
    """Returns (out, new_block_cache) like Attention.forward with use_cache=True,
    block_cache=None."""
    B, S, M = x.shape
    H, D = params["n_heads"], params["d_head"]
    HD = H * D
    cdt = params["compute_dtype"]

    # collapse batch into sublanes; cast MXU activation operand at the call boundary
    x2 = x.reshape(B * S, M).astype(cdt)

    kernel = _make_attention_kernel(B, S, H, D, M, cdt)

    out2, kv = pl.pallas_call(
        kernel,
        out_shape=(
            jax.ShapeDtypeStruct((B * S, M), x.dtype),
            jax.ShapeDtypeStruct((B, 2, S, HD), x.dtype),
        ),
        grid=(1,),   # single step: no grid overhead, no redundant weight buffering
        in_specs=[
            pl.BlockSpec((B * S, M), lambda i: (0, 0)),        # x (batch collapsed)
            pl.BlockSpec((M, 3 * HD), lambda i: (0, 0)),       # fused W_QKV (resident)
            pl.BlockSpec((1, 3 * HD), lambda i: (0, 0)),       # fused b_QKV
            pl.BlockSpec((HD, M), lambda i: (0, 0)),           # W_O
            pl.BlockSpec((1, M), lambda i: (0, 0)),            # b_O
        ],
        out_specs=(
            pl.BlockSpec((B * S, M), lambda i: (0, 0)),
            pl.BlockSpec((B, 2, S, HD), lambda i: (0, 0, 0, 0)),
        ),
    )(x2, params["w_qkv"], params["b_qkv"], params["w_o"], params["b_o"])

    out = out2.reshape(B, S, M)                     # free reshape
    # cache layout matches torch.stack([K, V], dim=1): (batch, 2, kv_pos, n_heads, d_head)
    new_block_cache = kv.reshape(B, 2, S, H, D)     # free reshape
    return out, new_block_cache


def reference_forward(x, wq, wk, wv, wo, bq, bk, bv, bo):
    """Pure-JAX reference mirroring the PyTorch einsum path."""
    D = wq.shape[-1]
    S = x.shape[1]
    Q = jnp.einsum('bpm,hmd->bphd', x, wq) + bq
    K = jnp.einsum('bpm,hmd->bphd', x, wk) + bk
    V = jnp.einsum('bpm,hmd->bphd', x, wv) + bv
    scores = jnp.einsum('bqhd,bkhd->bhqk', Q, K) / math.sqrt(D)
    mask = jnp.triu(jnp.ones((S, S), dtype=bool), k=1)
    scores = jnp.where(mask, -jnp.inf, scores)
    pattern = jax.nn.softmax(scores, axis=-1)
    z = jnp.einsum('bkhd,bhqk->bqhd', V, pattern)
    out = jnp.einsum('bqhd,hdm->bqm', z, wo) + bo
    cache = jnp.stack([K, V], axis=1)
    return out, cache


if __name__ == "__main__":
    # Small, Config-consistent shapes: batch=2, posn=8, d_model=32, n_heads=4, d_head=8
    B, S, M, H, D = 2, 8, 32, 4, 8
    init_range = 0.02

    key = jax.random.PRNGKey(0)
    kx, kq, kk, kv, ko, kb = jax.random.split(key, 6)
    x = jax.random.normal(kx, (B, S, M), dtype=jnp.float32)
    wq = jax.random.normal(kq, (H, M, D), dtype=jnp.float32) * init_range
    wk = jax.random.normal(kk, (H, M, D), dtype=jnp.float32) * init_range
    wv = jax.random.normal(kv, (H, M, D), dtype=jnp.float32) * init_range
    wo = jax.random.normal(ko, (H, D, M), dtype=jnp.float32) * init_range
    bqkvo = jax.random.normal(kb, (3 * H * D + M,), dtype=jnp.float32) * init_range
    bq = bqkvo[:H * D].reshape(H, D)
    bk = bqkvo[H * D:2 * H * D].reshape(H, D)
    bv = bqkvo[2 * H * D:3 * H * D].reshape(H, D)
    bo = bqkvo[3 * H * D:]

    out_ref, cache_ref = reference_forward(x, wq, wk, wv, wo, bq, bk, bv, bo)

    # --- f32 MXU path: near-exact parity (approx reciprocal only) ---
    params_f32 = prepare_attention_params(wq, wk, wv, wo, bq, bk, bv, bo,
                                          compute_dtype=jnp.float32)
    out_f32, cache_f32 = attention_forward(x, params_f32)
    jax.block_until_ready((out_f32, cache_f32))
    assert out_f32.shape == (B, S, M)
    assert cache_f32.shape == (B, 2, S, H, D)
    assert jnp.allclose(out_f32, out_ref, atol=1e-3, rtol=1e-3)
    assert jnp.allclose(cache_f32, cache_ref, atol=1e-4, rtol=1e-4)

    # --- bf16 MXU path (default / performance path): relaxed tolerances ---
    params_bf16 = prepare_attention_params(wq, wk, wv, wo, bq, bk, bv, bo,
                                           compute_dtype=jnp.bfloat16)
    out_bf16, cache_bf16 = attention_forward(x, params_bf16)
    jax.block_until_ready((out_bf16, cache_bf16))
    assert out_bf16.shape == (B, S, M)
    assert cache_bf16.shape == (B, 2, S, H, D)
    assert jnp.allclose(out_bf16, out_ref, atol=1e-2, rtol=5e-2)
    assert jnp.allclose(cache_bf16, cache_ref, atol=1e-2, rtol=5e-2)

    print("KERNEL_OK")
</pallas_src>

<mosaic_0001>
module attributes {stable_mosaic.version = 11 : i64} {
  func.func @kernel(%arg0: i32, %arg1: memref<16x32xf32, #tpu.memory_space<vmem>>, %arg2: memref<32x96xf32, #tpu.memory_space<vmem>>, %arg3: memref<1x96xf32, #tpu.memory_space<vmem>>, %arg4: memref<32x32xf32, #tpu.memory_space<vmem>>, %arg5: memref<1x32xf32, #tpu.memory_space<vmem>>, %arg6: memref<16x32xf32, #tpu.memory_space<vmem>>, %arg7: memref<2x2x8x32xf32, #tpu.memory_space<vmem>>) attributes {dimension_semantics = [#tpu.dimension_semantics<arbitrary>], iteration_bounds = array<i64: 1>, scalar_prefetch = 0 : i64, scratch_operands = 0 : i64, tpu.core_type = #tpu.core_type<tc>, window_params = [{pipeline_mode = #tpu.pipeline_mode<synchronous>, transform_indices = @transform_0, window_bounds = array<i64: 16, 32>}, {pipeline_mode = #tpu.pipeline_mode<synchronous>, transform_indices = @transform_1, window_bounds = array<i64: 32, 96>}, {pipeline_mode = #tpu.pipeline_mode<synchronous>, transform_indices = @transform_2, window_bounds = array<i64: 1, 96>}, {pipeline_mode = #tpu.pipeline_mode<synchronous>, transform_indices = @transform_3, window_bounds = array<i64: 32, 32>}, {pipeline_mode = #tpu.pipeline_mode<synchronous>, transform_indices = @transform_4, window_bounds = array<i64: 1, 32>}, {pipeline_mode = #tpu.pipeline_mode<synchronous>, transform_indices = @transform_5, window_bounds = array<i64: 16, 32>}, {pipeline_mode = #tpu.pipeline_mode<synchronous>, transform_indices = @transform_6, window_bounds = array<i64: 2, 2, 8, 32>}]} {
    %c0 = arith.constant 0 : index
    %c0_0 = arith.constant 0 : index
    %0 = vector.load %arg1[%c0, %c0_0] : memref<16x32xf32, #tpu.memory_space<vmem>>, vector<16x32xf32>
    %c0_1 = arith.constant 0 : index
    %c0_2 = arith.constant 0 : index
    %1 = vector.load %arg2[%c0_1, %c0_2] : memref<32x96xf32, #tpu.memory_space<vmem>>, vector<32x96xf32>
    %cst = arith.constant dense<0.000000e+00> : vector<16x96xf32>
    %2 = tpu.matmul %0, %1, %cst {dimension_numbers = #tpu.dot_dimension_numbers<[1], [0], [0], [1], [0, 0, 1, 1], [], []>} : vector<16x32xf32>, vector<32x96xf32>, vector<16x96xf32> -> vector<16x96xf32>
    %c0_3 = arith.constant 0 : index
    %c0_4 = arith.constant 0 : index
    %3 = vector.load %arg3[%c0_3, %c0_4] : memref<1x96xf32, #tpu.memory_space<vmem>>, vector<1x96xf32>
    %4 = vector.broadcast %3 : vector<1x96xf32> to vector<16x96xf32>
    %5 = arith.addf %2, %4 : vector<16x96xf32>
    %6 = vector.extract_strided_slice %5 {offsets = [0, 0], sizes = [16, 32], strides = [1, 1]} : vector<16x96xf32> to vector<16x32xf32>
    %7 = vector.extract_strided_slice %5 {offsets = [0, 32], sizes = [16, 32], strides = [1, 1]} : vector<16x96xf32> to vector<16x32xf32>
    %8 = vector.extract_strided_slice %5 {offsets = [0, 64], sizes = [16, 32], strides = [1, 1]} : vector<16x96xf32> to vector<16x32xf32>
    %9 = tpu.iota {dimensions = array<i32: 0>} : vector<8x8xi32>
    %10 = tpu.iota {dimensions = array<i32: 1>} : vector<8x8xi32>
    %11 = arith.cmpi sgt, %10, %9 : vector<8x8xi32>
    %12 = vector.extract_strided_slice %7 {offsets = [0, 0], sizes = [8, 32], strides = [1, 1]} : vector<16x32xf32> to vector<8x32xf32>
    %c0_5 = arith.constant 0 : index
    %c0_6 = arith.constant 0 : index
    %c0_7 = arith.constant 0 : index
    %c0_8 = arith.constant 0 : index
    %13 = vector.load %arg7[%c0_5, %c0_6, %c0_7, %c0_8] : memref<2x2x8x32xf32, #tpu.memory_space<vmem>>, vector<1x1x8x32xf32>
    %14 = vector.shape_cast %13 : vector<1x1x8x32xf32> to vector<8x32xf32>
    %15 = vector.shape_cast %12 : vector<8x32xf32> to vector<1x1x8x32xf32>
    tpu.vector_store %arg7[%c0_5, %c0_6, %c0_7, %c0_8], %15 {strides = array<i32>} : memref<2x2x8x32xf32, #tpu.memory_space<vmem>>, vector<1x1x8x32xf32>,
    %16 = vector.extract_strided_slice %8 {offsets = [0, 0], sizes = [8, 32], strides = [1, 1]} : vector<16x32xf32> to vector<8x32xf32>
    %c0_9 = arith.constant 0 : index
    %c1 = arith.constant 1 : index
    %c0_10 = arith.constant 0 : index
    %c0_11 = arith.constant 0 : index
    %17 = vector.load %arg7[%c0_9, %c1, %c0_10, %c0_11] : memref<2x2x8x32xf32, #tpu.memory_space<vmem>>, vector<1x1x8x32xf32>
    %18 = vector.shape_cast %17 : vector<1x1x8x32xf32> to vector<8x32xf32>
    %19 = vector.shape_cast %16 : vector<8x32xf32> to vector<1x1x8x32xf32>
    tpu.vector_store %arg7[%c0_9, %c1, %c0_10, %c0_11], %19 {strides = array<i32>} : memref<2x2x8x32xf32, #tpu.memory_space<vmem>>, vector<1x1x8x32xf32>,
    %20 = vector.extract_strided_slice %6 {offsets = [0, 0], sizes = [8, 8], strides = [1, 1]} : vector<16x32xf32> to vector<8x8xf32>
    %21 = vector.extract_strided_slice %7 {offsets = [0, 0], sizes = [8, 8], strides = [1, 1]} : vector<16x32xf32> to vector<8x8xf32>
    %22 = vector.extract_strided_slice %8 {offsets = [0, 0], sizes = [8, 8], strides = [1, 1]} : vector<16x32xf32> to vector<8x8xf32>
    %23 = tpu.transpose %21, [1, 0] : vector<8x8xf32> -> vector<8x8xf32>
    %cst_12 = arith.constant dense<0.000000e+00> : vector<8x8xf32>
    %24 = tpu.matmul %20, %23, %cst_12 {dimension_numbers = #tpu.dot_dimension_numbers<[1], [0], [0], [1], [0, 0, 1, 1], [], []>} : vector<8x8xf32>, vector<8x8xf32>, vector<8x8xf32> -> vector<8x8xf32>
    %cst_13 = arith.constant -3.40282347E+38 : f32
    %25 = vector.broadcast %cst_13 : f32 to vector<8x8xf32>
    %26 = arith.select %11, %25, %24 : vector<8x8xi1>, vector<8x8xf32>
    %cst_14 = arith.constant dense<0xFF800000> : vector<8xf32>
    %27 = vector.multi_reduction <maximumf>, %26, %cst_14 [1] : vector<8x8xf32> to vector<8xf32>
    %28 = vector.shape_cast %27 : vector<8xf32> to vector<8x1xf32>
    %29 = vector.broadcast %28 : vector<8x1xf32> to vector<8x8xf32>
    %30 = arith.subf %26, %29 : vector<8x8xf32>
    %31 = math.exp %30 : vector<8x8xf32>
    %cst_15 = arith.constant dense<0.000000e+00> : vector<8xf32>
    %32 = vector.multi_reduction <add>, %31, %cst_15 [1] : vector<8x8xf32> to vector<8xf32>
    %33 = vector.shape_cast %32 : vector<8xf32> to vector<8x1xf32>
    %34 = tpu.reciprocal %33 {approx = true} : vector<8x1xf32> -> vector<8x1xf32>
    %35 = vector.broadcast %34 : vector<8x1xf32> to vector<8x8xf32>
    %36 = arith.mulf %31, %35 : vector<8x8xf32>
    %cst_16 = arith.constant dense<0.000000e+00> : vector<8x8xf32>
    %37 = tpu.matmul %36, %22, %cst_16 {dimension_numbers = #tpu.dot_dimension_numbers<[1], [0], [0], [1], [0, 0, 1, 1], [], []>} : vector<8x8xf32>, vector<8x8xf32>, vector<8x8xf32> -> vector<8x8xf32>
    %38 = vector.extract_strided_slice %6 {offsets = [0, 8], sizes = [8, 8], strides = [1, 1]} : vector<16x32xf32> to vector<8x8xf32>
    %39 = vector.extract_strided_slice %7 {offsets = [0, 8], sizes = [8, 8], strides = [1, 1]} : vector<16x32xf32> to vector<8x8xf32>
    %40 = vector.extract_strided_slice %8 {offsets = [0, 8], sizes = [8, 8], strides = [1, 1]} : vector<16x32xf32> to vector<8x8xf32>
    %41 = tpu.transpose %39, [1, 0] : vector<8x8xf32> -> vector<8x8xf32>
    %cst_17 = arith.constant dense<0.000000e+00> : vector<8x8xf32>
    %42 = tpu.matmul %38, %41, %cst_17 {dimension_numbers = #tpu.dot_dimension_numbers<[1], [0], [0], [1], [0, 0, 1, 1], [], []>} : vector<8x8xf32>, vector<8x8xf32>, vector<8x8xf32> -> vector<8x8xf32>
    %cst_18 = arith.constant -3.40282347E+38 : f32
    %43 = vector.broadcast %cst_18 : f32 to vector<8x8xf32>
    %44 = arith.select %11, %43, %42 : vector<8x8xi1>, vector<8x8xf32>
    %cst_19 = arith.constant dense<0xFF800000> : vector<8xf32>
    %45 = vector.multi_reduction <maximumf>, %44, %cst_19 [1] : vector<8x8xf32> to vector<8xf32>
    %46 = vector.shape_cast %45 : vector<8xf32> to vector<8x1xf32>
    %47 = vector.broadcast %46 : vector<8x1xf32> to vector<8x8xf32>
    %48 = arith.subf %44, %47 : vector<8x8xf32>
    %49 = math.exp %48 : vector<8x8xf32>
    %cst_20 = arith.constant dense<0.000000e+00> : vector<8xf32>
    %50 = vector.multi_reduction <add>, %49, %cst_20 [1] : vector<8x8xf32> to vector<8xf32>
    %51 = vector.shape_cast %50 : vector<8xf32> to vector<8x1xf32>
    %52 = tpu.reciprocal %51 {approx = true} : vector<8x1xf32> -> vector<8x1xf32>
    %53 = vector.broadcast %52 : vector<8x1xf32> to vector<8x8xf32>
    %54 = arith.mulf %49, %53 : vector<8x8xf32>
    %cst_21 = arith.constant dense<0.000000e+00> : vector<8x8xf32>
    %55 = tpu.matmul %54, %40, %cst_21 {dimension_numbers = #tpu.dot_dimension_numbers<[1], [0], [0], [1], [0, 0, 1, 1], [], []>} : vector<8x8xf32>, vector<8x8xf32>, vector<8x8xf32> -> vector<8x8xf32>
    %56 = vector.extract_strided_slice %6 {offsets = [0, 16], sizes = [8, 8], strides = [1, 1]} : vector<16x32xf32> to vector<8x8xf32>
    %57 = vector.extract_strided_slice %7 {offsets = [0, 16], sizes = [8, 8], strides = [1, 1]} : vector<16x32xf32> to vector<8x8xf32>
    %58 = vector.extract_strided_slice %8 {offsets = [0, 16], sizes = [8, 8], strides = [1, 1]} : vector<16x32xf32> to vector<8x8xf32>
    %59 = tpu.transpose %57, [1, 0] : vector<8x8xf32> -> vector<8x8xf32>
    %cst_22 = arith.constant dense<0.000000e+00> : vector<8x8xf32>
    %60 = tpu.matmul %56, %59, %cst_22 {dimension_numbers = #tpu.dot_dimension_numbers<[1], [0], [0], [1], [0, 0, 1, 1], [], []>} : vector<8x8xf32>, vector<8x8xf32>, vector<8x8xf32> -> vector<8x8xf32>
    %cst_23 = arith.constant -3.40282347E+38 : f32
    %61 = vector.broadcast %cst_23 : f32 to vector<8x8xf32>
    %62 = arith.select %11, %61, %60 : vector<8x8xi1>, vector<8x8xf32>
    %cst_24 = arith.constant dense<0xFF800000> : vector<8xf32>
    %63 = vector.multi_reduction <maximumf>, %62, %cst_24 [1] : vector<8x8xf32> to vector<8xf32>
    %64 = vector.shape_cast %63 : vector<8xf32> to vector<8x1xf32>
    %65 = vector.broadcast %64 : vector<8x1xf32> to vector<8x8xf32>
    %66 = arith.subf %62, %65 : vector<8x8xf32>
    %67 = math.exp %66 : vector<8x8xf32>
    %cst_25 = arith.constant dense<0.000000e+00> : vector<8xf32>
    %68 = vector.multi_reduction <add>, %67, %cst_25 [1] : vector<8x8xf32> to vector<8xf32>
    %69 = vector.shape_cast %68 : vector<8xf32> to vector<8x1xf32>
    %70 = tpu.reciprocal %69 {approx = true} : vector<8x1xf32> -> vector<8x1xf32>
    %71 = vector.broadcast %70 : vector<8x1xf32> to vector<8x8xf32>
    %72 = arith.mulf %67, %71 : vector<8x8xf32>
    %cst_26 = arith.constant dense<0.000000e+00> : vector<8x8xf32>
    %73 = tpu.matmul %72, %58, %cst_26 {dimension_numbers = #tpu.dot_dimension_numbers<[1], [0], [0], [1], [0, 0, 1, 1], [], []>} : vector<8x8xf32>, vector<8x8xf32>, vector<8x8xf32> -> vector<8x8xf32>
    %74 = vector.extract_strided_slice %6 {offsets = [0, 24], sizes = [8, 8], strides = [1, 1]} : vector<16x32xf32> to vector<8x8xf32>
    %75 = vector.extract_strided_slice %7 {offsets = [0, 24], sizes = [8, 8], strides = [1, 1]} : vector<16x32xf32> to vector<8x8xf32>
    %76 = vector.extract_strided_slice %8 {offsets = [0, 24], sizes = [8, 8], strides = [1, 1]} : vector<16x32xf32> to vector<8x8xf32>
    %77 = tpu.transpose %75, [1, 0] : vector<8x8xf32> -> vector<8x8xf32>
    %cst_27 = arith.constant dense<0.000000e+00> : vector<8x8xf32>
    %78 = tpu.matmul %74, %77, %cst_27 {dimension_numbers = #tpu.dot_dimension_numbers<[1], [0], [0], [1], [0, 0, 1, 1], [], []>} : vector<8x8xf32>, vector<8x8xf32>, vector<8x8xf32> -> vector<8x8xf32>
    %cst_28 = arith.constant -3.40282347E+38 : f32
    %79 = vector.broadcast %cst_28 : f32 to vector<8x8xf32>
    %80 = arith.select %11, %79, %78 : vector<8x8xi1>, vector<8x8xf32>
    %cst_29 = arith.constant dense<0xFF800000> : vector<8xf32>
    %81 = vector.multi_reduction <maximumf>, %80, %cst_29 [1] : vector<8x8xf32> to vector<8xf32>
    %82 = vector.shape_cast %81 : vector<8xf32> to vector<8x1xf32>
    %83 = vector.broadcast %82 : vector<8x1xf32> to vector<8x8xf32>
    %84 = arith.subf %80, %83 : vector<8x8xf32>
    %85 = math.exp %84 : vector<8x8xf32>
    %cst_30 = arith.constant dense<0.000000e+00> : vector<8xf32>
    %86 = vector.multi_reduction <add>, %85, %cst_30 [1] : vector<8x8xf32> to vector<8xf32>
    %87 = vector.shape_cast %86 : vector<8xf32> to vector<8x1xf32>
    %88 = tpu.reciprocal %87 {approx = true} : vector<8x1xf32> -> vector<8x1xf32>
    %89 = vector.broadcast %88 : vector<8x1xf32> to vector<8x8xf32>
    %90 = arith.mulf %85, %89 : vector<8x8xf32>
    %cst_31 = arith.constant dense<0.000000e+00> : vector<8x8xf32>
    %91 = tpu.matmul %90, %76, %cst_31 {dimension_numbers = #tpu.dot_dimension_numbers<[1], [0], [0], [1], [0, 0, 1, 1], [], []>} : vector<8x8xf32>, vector<8x8xf32>, vector<8x8xf32> -> vector<8x8xf32>
    %92 = tpu.concatenate %37, %55, %73, %91 in 1 : vector<8x8xf32>, vector<8x8xf32>, vector<8x8xf32>, vector<8x8xf32> -> vector<8x32xf32>
    %93 = vector.extract_strided_slice %7 {offsets = [8, 0], sizes = [8, 32], strides = [1, 1]} : vector<16x32xf32> to vector<8x32xf32>
    %c1_32 = arith.constant 1 : index
    %c0_33 = arith.constant 0 : index
    %c0_34 = arith.constant 0 : index
    %c0_35 = arith.constant 0 : index
    %94 = vector.load %arg7[%c1_32, %c0_33, %c0_34, %c0_35] : memref<2x2x8x32xf32, #tpu.memory_space<vmem>>, vector<1x1x8x32xf32>
    %95 = vector.shape_cast %94 : vector<1x1x8x32xf32> to vector<8x32xf32>
    %96 = vector.shape_cast %93 : vector<8x32xf32> to vector<1x1x8x32xf32>
    tpu.vector_store %arg7[%c1_32, %c0_33, %c0_34, %c0_35], %96 {strides = array<i32>} : memref<2x2x8x32xf32, #tpu.memory_space<vmem>>, vector<1x1x8x32xf32>,
    %97 = vector.extract_strided_slice %8 {offsets = [8, 0], sizes = [8, 32], strides = [1, 1]} : vector<16x32xf32> to vector<8x32xf32>
    %c1_36 = arith.constant 1 : index
    %c1_37 = arith.constant 1 : index
    %c0_38 = arith.constant 0 : index
    %c0_39 = arith.constant 0 : index
    %98 = vector.load %arg7[%c1_36, %c1_37, %c0_38, %c0_39] : memref<2x2x8x32xf32, #tpu.memory_space<vmem>>, vector<1x1x8x32xf32>
    %99 = vector.shape_cast %98 : vector<1x1x8x32xf32> to vector<8x32xf32>
    %100 = vector.shape_cast %97 : vector<8x32xf32> to vector<1x1x8x32xf32>
    tpu.vector_store %arg7[%c1_36, %c1_37, %c0_38, %c0_39], %100 {strides = array<i32>} : memref<2x2x8x32xf32, #tpu.memory_space<vmem>>, vector<1x1x8x32xf32>,
    %101 = vector.extract_strided_slice %6 {offsets = [8, 0], sizes = [8, 8], strides = [1, 1]} : vector<16x32xf32> to vector<8x8xf32>
    %102 = vector.extract_strided_slice %7 {offsets = [8, 0], sizes = [8, 8], strides = [1, 1]} : vector<16x32xf32> to vector<8x8xf32>
    %103 = vector.extract_strided_slice %8 {offsets = [8, 0], sizes = [8, 8], strides = [1, 1]} : vector<16x32xf32> to vector<8x8xf32>
    %104 = tpu.transpose %102, [1, 0] : vector<8x8xf32> -> vector<8x8xf32>
    %cst_40 = arith.constant dense<0.000000e+00> : vector<8x8xf32>
    %105 = tpu.matmul %101, %104, %cst_40 {dimension_numbers = #tpu.dot_dimension_numbers<[1], [0], [0], [1], [0, 0, 1, 1], [], []>} : vector<8x8xf32>, vector<8x8xf32>, vector<8x8xf32> -> vector<8x8xf32>
    %cst_41 = arith.constant -3.40282347E+38 : f32
    %106 = vector.broadcast %cst_41 : f32 to vector<8x8xf32>
    %107 = arith.select %11, %106, %105 : vector<8x8xi1>, vector<8x8xf32>
    %cst_42 = arith.constant dense<0xFF800000> : vector<8xf32>
    %108 = vector.multi_reduction <maximumf>, %107, %cst_42 [1] : vector<8x8xf32> to vector<8xf32>
    %109 = vector.shape_cast %108 : vector<8xf32> to vector<8x1xf32>
    %110 = vector.broadcast %109 : vector<8x1xf32> to vector<8x8xf32>
    %111 = arith.subf %107, %110 : vector<8x8xf32>
    %112 = math.exp %111 : vector<8x8xf32>
    %cst_43 = arith.constant dense<0.000000e+00> : vector<8xf32>
    %113 = vector.multi_reduction <add>, %112, %cst_43 [1] : vector<8x8xf32> to vector<8xf32>
    %114 = vector.shape_cast %113 : vector<8xf32> to vector<8x1xf32>
    %115 = tpu.reciprocal %114 {approx = true} : vector<8x1xf32> -> vector<8x1xf32>
    %116 = vector.broadcast %115 : vector<8x1xf32> to vector<8x8xf32>
    %117 = arith.mulf %112, %116 : vector<8x8xf32>
    %cst_44 = arith.constant dense<0.000000e+00> : vector<8x8xf32>
    %118 = tpu.matmul %117, %103, %cst_44 {dimension_numbers = #tpu.dot_dimension_numbers<[1], [0], [0], [1], [0, 0, 1, 1], [], []>} : vector<8x8xf32>, vector<8x8xf32>, vector<8x8xf32> -> vector<8x8xf32>
    %119 = vector.extract_strided_slice %6 {offsets = [8, 8], sizes = [8, 8], strides = [1, 1]} : vector<16x32xf32> to vector<8x8xf32>
    %120 = vector.extract_strided_slice %7 {offsets = [8, 8], sizes = [8, 8], strides = [1, 1]} : vector<16x32xf32> to vector<8x8xf32>
    %121 = vector.extract_strided_slice %8 {offsets = [8, 8], sizes = [8, 8], strides = [1, 1]} : vector<16x32xf32> to vector<8x8xf32>
    %122 = tpu.transpose %120, [1, 0] : vector<8x8xf32> -> vector<8x8xf32>
    %cst_45 = arith.constant dense<0.000000e+00> : vector<8x8xf32>
    %123 = tpu.matmul %119, %122, %cst_45 {dimension_numbers = #tpu.dot_dimension_numbers<[1], [0], [0], [1], [0, 0, 1, 1], [], []>} : vector<8x8xf32>, vector<8x8xf32>, vector<8x8xf32> -> vector<8x8xf32>
    %cst_46 = arith.constant -3.40282347E+38 : f32
    %124 = vector.broadcast %cst_46 : f32 to vector<8x8xf32>
    %125 = arith.select %11, %124, %123 : vector<8x8xi1>, vector<8x8xf32>
    %cst_47 = arith.constant dense<0xFF800000> : vector<8xf32>
    %126 = vector.multi_reduction <maximumf>, %125, %cst_47 [1] : vector<8x8xf32> to vector<8xf32>
    %127 = vector.shape_cast %126 : vector<8xf32> to vector<8x1xf32>
    %128 = vector.broadcast %127 : vector<8x1xf32> to vector<8x8xf32>
    %129 = arith.subf %125, %128 : vector<8x8xf32>
    %130 = math.exp %129 : vector<8x8xf32>
    %cst_48 = arith.constant dense<0.000000e+00> : vector<8xf32>
    %131 = vector.multi_reduction <add>, %130, %cst_48 [1] : vector<8x8xf32> to vector<8xf32>
    %132 = vector.shape_cast %131 : vector<8xf32> to vector<8x1xf32>
    %133 = tpu.reciprocal %132 {approx = true} : vector<8x1xf32> -> vector<8x1xf32>
    %134 = vector.broadcast %133 : vector<8x1xf32> to vector<8x8xf32>
    %135 = arith.mulf %130, %134 : vector<8x8xf32>
    %cst_49 = arith.constant dense<0.000000e+00> : vector<8x8xf32>
    %136 = tpu.matmul %135, %121, %cst_49 {dimension_numbers = #tpu.dot_dimension_numbers<[1], [0], [0], [1], [0, 0, 1, 1], [], []>} : vector<8x8xf32>, vector<8x8xf32>, vector<8x8xf32> -> vector<8x8xf32>
    %137 = vector.extract_strided_slice %6 {offsets = [8, 16], sizes = [8, 8], strides = [1, 1]} : vector<16x32xf32> to vector<8x8xf32>
    %138 = vector.extract_strided_slice %7 {offsets = [8, 16], sizes = [8, 8], strides = [1, 1]} : vector<16x32xf32> to vector<8x8xf32>
    %139 = vector.extract_strided_slice %8 {offsets = [8, 16], sizes = [8, 8], strides = [1, 1]} : vector<16x32xf32> to vector<8x8xf32>
    %140 = tpu.transpose %138, [1, 0] : vector<8x8xf32> -> vector<8x8xf32>
    %cst_50 = arith.constant dense<0.000000e+00> : vector<8x8xf32>
    %141 = tpu.matmul %137, %140, %cst_50 {dimension_numbers = #tpu.dot_dimension_numbers<[1], [0], [0], [1], [0, 0, 1, 1], [], []>} : vector<8x8xf32>, vector<8x8xf32>, vector<8x8xf32> -> vector<8x8xf32>
    %cst_51 = arith.constant -3.40282347E+38 : f32
    %142 = vector.broadcast %cst_51 : f32 to vector<8x8xf32>
    %143 = arith.select %11, %142, %141 : vector<8x8xi1>, vector<8x8xf32>
    %cst_52 = arith.constant dense<0xFF800000> : vector<8xf32>
    %144 = vector.multi_reduction <maximumf>, %143, %cst_52 [1] : vector<8x8xf32> to vector<8xf32>
    %145 = vector.shape_cast %144 : vector<8xf32> to vector<8x1xf32>
    %146 = vector.broadcast %145 : vector<8x1xf32> to vector<8x8xf32>
    %147 = arith.subf %143, %146 : vector<8x8xf32>
    %148 = math.exp %147 : vector<8x8xf32>
    %cst_53 = arith.constant dense<0.000000e+00> : vector<8xf32>
    %149 = vector.multi_reduction <add>, %148, %cst_53 [1] : vector<8x8xf32> to vector<8xf32>
    %150 = vector.shape_cast %149 : vector<8xf32> to vector<8x1xf32>
    %151 = tpu.reciprocal %150 {approx = true} : vector<8x1xf32> -> vector<8x1xf32>
    %152 = vector.broadcast %151 : vector<8x1xf32> to vector<8x8xf32>
    %153 = arith.mulf %148, %152 : vector<8x8xf32>
    %cst_54 = arith.constant dense<0.000000e+00> : vector<8x8xf32>
    %154 = tpu.matmul %153, %139, %cst_54 {dimension_numbers = #tpu.dot_dimension_numbers<[1], [0], [0], [1], [0, 0, 1, 1], [], []>} : vector<8x8xf32>, vector<8x8xf32>, vector<8x8xf32> -> vector<8x8xf32>
    %155 = vector.extract_strided_slice %6 {offsets = [8, 24], sizes = [8, 8], strides = [1, 1]} : vector<16x32xf32> to vector<8x8xf32>
    %156 = vector.extract_strided_slice %7 {offsets = [8, 24], sizes = [8, 8], strides = [1, 1]} : vector<16x32xf32> to vector<8x8xf32>
    %157 = vector.extract_strided_slice %8 {offsets = [8, 24], sizes = [8, 8], strides = [1, 1]} : vector<16x32xf32> to vector<8x8xf32>
    %158 = tpu.transpose %156, [1, 0] : vector<8x8xf32> -> vector<8x8xf32>
    %cst_55 = arith.constant dense<0.000000e+00> : vector<8x8xf32>
    %159 = tpu.matmul %155, %158, %cst_55 {dimension_numbers = #tpu.dot_dimension_numbers<[1], [0], [0], [1], [0, 0, 1, 1], [], []>} : vector<8x8xf32>, vector<8x8xf32>, vector<8x8xf32> -> vector<8x8xf32>
    %cst_56 = arith.constant -3.40282347E+38 : f32
    %160 = vector.broadcast %cst_56 : f32 to vector<8x8xf32>
    %161 = arith.select %11, %160, %159 : vector<8x8xi1>, vector<8x8xf32>
    %cst_57 = arith.constant dense<0xFF800000> : vector<8xf32>
    %162 = vector.multi_reduction <maximumf>, %161, %cst_57 [1] : vector<8x8xf32> to vector<8xf32>
    %163 = vector.shape_cast %162 : vector<8xf32> to vector<8x1xf32>
    %164 = vector.broadcast %163 : vector<8x1xf32> to vector<8x8xf32>
    %165 = arith.subf %161, %164 : vector<8x8xf32>
    %166 = math.exp %165 : vector<8x8xf32>
    %cst_58 = arith.constant dense<0.000000e+00> : vector<8xf32>
    %167 = vector.multi_reduction <add>, %166, %cst_58 [1] : vector<8x8xf32> to vector<8xf32>
    %168 = vector.shape_cast %167 : vector<8xf32> to vector<8x1xf32>
    %169 = tpu.reciprocal %168 {approx = true} : vector<8x1xf32> -> vector<8x1xf32>
    %170 = vector.broadcast %169 : vector<8x1xf32> to vector<8x8xf32>
    %171 = arith.mulf %166, %170 : vector<8x8xf32>
    %cst_59 = arith.constant dense<0.000000e+00> : vector<8x8xf32>
    %172 = tpu.matmul %171, %157, %cst_59 {dimension_numbers = #tpu.dot_dimension_numbers<[1], [0], [0], [1], [0, 0, 1, 1], [], []>} : vector<8x8xf32>, vector<8x8xf32>, vector<8x8xf32> -> vector<8x8xf32>
    %173 = tpu.concatenate %118, %136, %154, %172 in 1 : vector<8x8xf32>, vector<8x8xf32>, vector<8x8xf32>, vector<8x8xf32> -> vector<8x32xf32>
    %174 = tpu.concatenate %92, %173 in 0 : vector<8x32xf32>, vector<8x32xf32> -> vector<16x32xf32>
    %c0_60 = arith.constant 0 : index
    %c0_61 = arith.constant 0 : index
    %175 = vector.load %arg4[%c0_60, %c0_61] : memref<32x32xf32, #tpu.memory_space<vmem>>, vector<32x32xf32>
    %cst_62 = arith.constant dense<0.000000e+00> : vector<16x32xf32>
    %176 = tpu.matmul %174, %175, %cst_62 {dimension_numbers = #tpu.dot_dimension_numbers<[1], [0], [0], [1], [0, 0, 1, 1], [], []>} : vector<16x32xf32>, vector<32x32xf32>, vector<16x32xf32> -> vector<16x32xf32>
    %c0_63 = arith.constant 0 : index
    %c0_64 = arith.constant 0 : index
    %177 = vector.load %arg5[%c0_63, %c0_64] : memref<1x32xf32, #tpu.memory_space<vmem>>, vector<1x32xf32>
    %178 = vector.broadcast %177 : vector<1x32xf32> to vector<16x32xf32>
    %179 = arith.addf %176, %178 : vector<16x32xf32>
    %c0_65 = arith.constant 0 : index
    %c0_66 = arith.constant 0 : index
    %180 = vector.load %arg6[%c0_65, %c0_66] : memref<16x32xf32, #tpu.memory_space<vmem>>, vector<16x32xf32>
    tpu.vector_store %arg6[%c0_65, %c0_66], %179 {strides = array<i32>} : memref<16x32xf32, #tpu.memory_space<vmem>>, vector<16x32xf32>,
    return
  }
  func.func @transform_0(%arg0: i32) -> (i32, i32) {
    %c0_i32 = arith.constant 0 : i32
    %c0_i32_0 = arith.constant 0 : i32
    %c0_i32_1 = arith.constant 0 : i32
    return %c0_i32, %c0_i32_0 : i32, i32
  }
  func.func @transform_1(%arg0: i32) -> (i32, i32) {
    %c0_i32 = arith.constant 0 : i32
    %c0_i32_0 = arith.constant 0 : i32
    %c0_i32_1 = arith.constant 0 : i32
    return %c0_i32, %c0_i32_0 : i32, i32
  }
  func.func @transform_2(%arg0: i32) -> (i32, i32) {
    %c0_i32 = arith.constant 0 : i32
    %c0_i32_0 = arith.constant 0 : i32
    %c0_i32_1 = arith.constant 0 : i32
    return %c0_i32, %c0_i32_0 : i32, i32
  }
  func.func @transform_3(%arg0: i32) -> (i32, i32) {
    %c0_i32 = arith.constant 0 : i32
    %c0_i32_0 = arith.constant 0 : i32
    %c0_i32_1 = arith.constant 0 : i32
    return %c0_i32, %c0_i32_0 : i32, i32
  }
  func.func @transform_4(%arg0: i32) -> (i32, i32) {
    %c0_i32 = arith.constant 0 : i32
    %c0_i32_0 = arith.constant 0 : i32
    %c0_i32_1 = arith.constant 0 : i32
    return %c0_i32, %c0_i32_0 : i32, i32
  }
  func.func @transform_5(%arg0: i32) -> (i32, i32) {
    %c0_i32 = arith.constant 0 : i32
    %c0_i32_0 = arith.constant 0 : i32
    %c0_i32_1 = arith.constant 0 : i32
    return %c0_i32, %c0_i32_0 : i32, i32
  }
  func.func @transform_6(%arg0: i32) -> (i32, i32, i32, i32) {
    %c0_i32 = arith.constant 0 : i32
    %c0_i32_0 = arith.constant 0 : i32
    %c0_i32_1 = arith.constant 0 : i32
    %c0_i32_2 = arith.constant 0 : i32
    %c0_i32_3 = arith.constant 0 : i32
    return %c0_i32, %c0_i32_0, %c0_i32_1, %c0_i32_2 : i32, i32, i32, i32
  }
}

</mosaic_0001>

<llo_original>
// kernel: tpu_custom_call.1
$region0: #{tpu_custom_call.1}
  #allocation0 [shape = 'u32[]', space=smem, size = 0x4, offset = 0x4, fixed_abs, tag = 'smem constant byte address 0x4 - core index']
  #allocation1 [shape = 'u32[144,128]{1,0:T(1,128)}', space=vmem, size = 0x12000, scoped, tag = 'internal scratch']
  %s0 = inlined_call_operand.hbm [shape: f32[16,32], index: 0, kind: input, shape index: {}]
  %s1 = inlined_call_operand.hbm [shape: f32[32,96], index: 1, kind: input, shape index: {}]
  %s2 = inlined_call_operand.vmem [shape: f32[1,96], index: 2, kind: input, shape index: {}]
  %s3 = inlined_call_operand.hbm [shape: f32[32,32], index: 3, kind: input, shape index: {}]
  %s4 = inlined_call_operand.vmem [shape: f32[1,32], index: 4, kind: input, shape index: {}]
  %s5 = inlined_call_operand.hbm [shape: f32[16,32], index: 5, kind: output, shape index: {0}]
  %s6 = inlined_call_operand.hbm [shape: f32[2,2,8,32], index: 6, kind: output, shape index: {1}]
  %7 = xla_tuple %s5, %s6
  %s8 = sld [smem:[#allocation0]]
  $region50: #{tpu_custom_call.1} parent=0
    _
  %s10 = ssub.s32 1, %s8
  %s11 = scalar_select 0, %s10, %s8
  $region1: #{tpu_custom_call.1} parent=0
    #allocation2 [shape = 'u8[8192]{0}', space=vmem, size = 0x2000, scoped, tag = 'input window, operand 0, single buffered']
    #allocation3 [shape = 's32[1]{0}', space=sflag, size = 0x4, scoped, tag = 'scoped memory for tpu_custom_call.1']
    #allocation4 [shape = 's32[1]{0}', space=sflag, size = 0x4, scoped, tag = 'scoped memory for tpu_custom_call.1']
    #allocation5 [shape = 'u8[16384]{0}', space=vmem, size = 0x4000, scoped, tag = 'input window, operand 1, single buffered']
    #allocation6 [shape = 's32[1]{0}', space=sflag, size = 0x4, scoped, tag = 'scoped memory for tpu_custom_call.1']
    #allocation7 [shape = 'u8[16384]{0}', space=vmem, size = 0x4000, scoped, tag = 'input window, operand 3, single buffered']
    #allocation8 [shape = 'u8[8192]{0}', space=vmem, size = 0x2000, scoped, tag = 'output window, operand 0, single buffered']
    #allocation9 [shape = 'u8[16384]{0}', space=vmem, size = 0x4000, scoped, tag = 'output window, operand 1, single buffered']
    #allocation10 [shape = 's32[1]{0}', space=sflag, size = 0x4, scoped, tag = 'scoped memory for tpu_custom_call.1']
    %12 = vsyncpa [#allocation3], 0
    %13 = vsyncpa [#allocation6], 0
    %14 = vsyncpa [#allocation4], 0
    %15 = vsyncpa [#allocation10], 0
    // Predicated region
    $region2: #{tpu_custom_call.1} parent=1 // pred_check
      _
    $region3: #{tpu_custom_call.1} parent=1 // pred_check_branch
      %17 = sbr.rel (0) target = $region5
    $region4: #{tpu_custom_call.1} parent=1 // pred_region
      %s19 = ssub.s32 256, 256
      %20 = vsyncadd [#allocation3], %s19
      %s21 = sshll.u32 [#allocation2], 4
      %s22 = int_to_ptr.vmem [resolvable:$true] %s21
      %27 = dma.hbm_to_vmem [thread:$0]  %s0, 256, %s22, [#allocation3], 128, 128, 8
    $region5: #{tpu_custom_call.1} parent=1 // pred_fallthru
      _
    // Predicated region
    $region6: #{tpu_custom_call.1} parent=1 // pred_check
      _
    $region7: #{tpu_custom_call.1} parent=1 // pred_check_branch
      %29 = sbr.rel (0) target = $region9
    $region8: #{tpu_custom_call.1} parent=1 // pred_region
      %s31 = ssub.s32 512, 512
      %32 = vsyncadd [#allocation6], %s31
      %s33 = sshll.u32 [#allocation5], 4
      %s34 = int_to_ptr.vmem [resolvable:$true] %s33
      %39 = dma.hbm_to_vmem [thread:$0]  %s1, 512, %s34, [#allocation6], 128, 128, 8
    $region9: #{tpu_custom_call.1} parent=1 // pred_fallthru
      _
    // Predicated region
    $region10: #{tpu_custom_call.1} parent=1 // pred_check
      _
    $region11: #{tpu_custom_call.1} parent=1 // pred_check_branch
      %41 = sbr.rel (0) target = $region13
    $region12: #{tpu_custom_call.1} parent=1 // pred_region
      _
    $region13: #{tpu_custom_call.1} parent=1 // pred_fallthru
      _
    // Predicated region
    $region14: #{tpu_custom_call.1} parent=1 // pred_check
      _
    $region15: #{tpu_custom_call.1} parent=1 // pred_check_branch
      %43 = sbr.rel (0) target = $region17
    $region16: #{tpu_custom_call.1} parent=1 // pred_region
      %s45 = ssub.s32 512, 512
      %46 = vsyncadd [#allocation6], %s45
      %s47 = sshll.u32 [#allocation7], 4
      %s48 = int_to_ptr.vmem [resolvable:$true] %s47
      %53 = dma.hbm_to_vmem [thread:$0]  %s3, 512, %s48, [#allocation6], 128, 128, 8
    $region17: #{tpu_custom_call.1} parent=1 // pred_fallthru
      _
    // Predicated region
    $region18: #{tpu_custom_call.1} parent=1 // pred_check
      _
    $region19: #{tpu_custom_call.1} parent=1 // pred_check_branch
      %55 = sbr.rel (0) target = $region21
    $region20: #{tpu_custom_call.1} parent=1 // pred_region
      _
    $region21: #{tpu_custom_call.1} parent=1 // pred_fallthru
      _
    // Predicated region
    $region22: #{tpu_custom_call.1} parent=1 // pred_check
      _
    $region23: #{tpu_custom_call.1} parent=1 // pred_check_branch
      %57 = sbr.rel (0) target = $region25
    $region24: #{tpu_custom_call.1} parent=1 // pred_region
      %58 = dma.done [#allocation3], 256
    $region25: #{tpu_custom_call.1} parent=1 // pred_fallthru
      _
    // Predicated region
    $region26: #{tpu_custom_call.1} parent=1 // pred_check
      _
    $region27: #{tpu_custom_call.1} parent=1 // pred_check_branch
      %60 = sbr.rel (0) target = $region29
    $region28: #{tpu_custom_call.1} parent=1 // pred_region
      %61 = dma.done [#allocation6], 512
    $region29: #{tpu_custom_call.1} parent=1 // pred_fallthru
      _
    // Predicated region
    $region30: #{tpu_custom_call.1} parent=1 // pred_check
      _
    $region31: #{tpu_custom_call.1} parent=1 // pred_check_branch
      %63 = sbr.rel (0) target = $region33
    $region32: #{tpu_custom_call.1} parent=1 // pred_region
      %64 = dma.done [#allocation6], 512
    $region33: #{tpu_custom_call.1} parent=1 // pred_fallthru
      _
    %v65 = vld [vmem:[#allocation2] sm:$0xff]
    %v66 = vld [vmem:[#allocation2 + $0x8] sm:$0xff]
    %v67 = vld [vmem:[#allocation5] sm:$0xff]
    %v68 = vld [vmem:[#allocation5 + $0x8] sm:$0xff]
    %v69 = vld [vmem:[#allocation5 + $0x10] sm:$0xff]
    %v70 = vld [vmem:[#allocation5 + $0x18] sm:$0xff]
    %v71 = vld [vmem:[%s2] sm:$0x1]
    %v73 = vlaneseq
    %v74 = vshrl.u32 %v73, 7
    %v75 = vsub.s32 0, %v74
    %v76 = vrot.slane %v71, %v75
    %vm78 = vcmask 261120
    %v80 = vsel %vm78, %v65, 0
    %v83 = vsel %vm78, %v66, 0
    %85 = vmatprep.subr.mxu0 0.0
    %86 = vmatpush1.msra.mxu0 0.0
    %87 = vmatprep.subr.mxu0 0.0
    %88 = vmatpush1.msra.mxu0 0.0
    %89 = vmatprep.subr.mxu0 0.0
    %90 = vmatpush1.msra.mxu0 0.0
    %91 = vmatprep.subr.mxu0 0.0
    %92 = vmatpush1.msra.mxu0 0.0
    %93 = vmatprep.subr.mxu0 0.0
    %94 = vmatpush1.msra.mxu0 0.0
    %95 = vmatprep.subr.mxu0 0.0
    %96 = vmatpush1.msra.mxu0 0.0
    %97 = vmatprep.subr.mxu0 0.0
    %98 = vmatpush1.msra.mxu0 0.0
    %99 = vmatprep.subr.mxu0 0.0
    %100 = vmatpush1.msra.mxu0 0.0
    %101 = vmatprep.subr.mxu0 0.0
    %102 = vmatpush1.msra.mxu0 0.0
    %103 = vmatprep.subr.mxu0 0.0
    %104 = vmatpush1.msra.mxu0 0.0
    %105 = vmatprep.subr.mxu0 0.0
    %106 = vmatpush1.msra.mxu0 0.0
    %107 = vmatprep.subr.mxu0 0.0
    %108 = vmatpush1.msra.mxu0 0.0
    %109 = vmatprep.subr.mxu0 0.0
    %110 = vmatpush1.msra.mxu0 %v70
    %111 = vmatprep.subr.mxu0 0.0
    %112 = vmatpush1.msra.mxu0 %v69
    %113 = vmatprep.subr.mxu0 0.0
    %114 = vmatpush1.msra.mxu0 %v68
    %115 = vmatprep.subr.mxu0 0.0
    %116 = vmatpush1.msra.mxu0 %v67
    %117 = vmatprep.subr.mxu0 0.0
    %118 = vmatpush2.msra.mxu0 0.0
    %119 = vmatprep.subr.mxu0 0.0
    %120 = vmatpush2.msra.mxu0 0.0
    %121 = vmatprep.subr.mxu0 0.0
    %122 = vmatpush2.msra.mxu0 0.0
    %123 = vmatprep.subr.mxu0 0.0
    %124 = vmatpush2.msra.mxu0 0.0
    %125 = vmatprep.subr.mxu0 0.0
    %126 = vmatpush2.msra.mxu0 0.0
    %127 = vmatprep.subr.mxu0 0.0
    %128 = vmatpush2.msra.mxu0 0.0
    %129 = vmatprep.subr.mxu0 0.0
    %130 = vmatpush2.msra.mxu0 0.0
    %131 = vmatprep.subr.mxu0 0.0
    %132 = vmatpush2.msra.mxu0 0.0
    %133 = vmatprep.subr.mxu0 0.0
    %134 = vmatpush2.msra.mxu0 0.0
    %135 = vmatprep.subr.mxu0 0.0
    %136 = vmatpush2.msra.mxu0 0.0
    %137 = vmatprep.subr.mxu0 0.0
    %138 = vmatpush2.msra.mxu0 0.0
    %139 = vmatprep.subr.mxu0 0.0
    %140 = vmatpush2.msra.mxu0 0.0
    %141 = vmatprep.subr.mxu0 0.0
    %142 = vmatpush2.msra.mxu0 0.0
    %143 = vmatprep.subr.mxu0 0.0
    %144 = vmatpush2.msra.mxu0 0.0
    %145 = vmatprep.subr.mxu0 0.0
    %146 = vmatpush2.msra.mxu0 0.0
    %147 = vmatprep.subr.mxu0 0.0
    %148 = vmatpush2.msra.mxu0 0.0
    %149 = vmatprep.mubr.f32.mxu0 0.0
    %150 = vmatmul.mubr.f32.gmra.mxu0 %v80
    %v151 = vpop.f32.mrf.mxu0
    %v152 = vadd.f32 %v76, %v151
    %v153 = vpop.f32.mrf.mxu0
    %154 = vmatprep.mubr.f32.mxu0 0.0
    %155 = vmatmul.mubr.f32.gmra.mxu0 %v83
    %v156 = vpop.f32.mrf.mxu0
    %v157 = vadd.f32 %v76, %v156
    %v158 = vpop.f32.mrf.mxu0
    %159 = vdwg.mxu0
    %v160 = vlaneseq
    %v161 = vshrl.u32 %v160, 7
    %v162 = vlaneseq
    %v163 = vand.u32 %v162, 127
    %vm164 = vcmp.gt.s32.totalorder %v163, %v161
    %166 = vrot.lane.b32.xlu0 %v152, 96
    %v167 = vpop.permute.xlu0 %166
    %169 = vst.msk [vmem:[#allocation9] sm:$0xff] %vm78, %v167
    %170 = vrot.lane.b32.xlu0 %v152, 64
    %v171 = vpop.permute.xlu0 %170
    %s173 = scalar_lea.vmem [#allocation9], 8
    %174 = vst.msk [vmem:[%s173] sm:$0xff] %vm78, %v171
    %vm175 = vcmask 64512
    %v176 = vsel %vm175, %v152, 0
    %v178 = vsel %vm175, %v167, 0
    %180 = vmatprep.subr.mxu0 0.0
    %181 = vmatpush1.xpose.msra.mxu0 0.0
    %182 = vmatprep.subr.mxu0 0.0
    %183 = vmatpush1.xpose.msra.mxu0 0.0
    %184 = vmatprep.subr.mxu0 0.0
    %185 = vmatpush1.xpose.msra.mxu0 0.0
    %186 = vmatprep.subr.mxu0 0.0
    %187 = vmatpush1.xpose.msra.mxu0 0.0
    %188 = vmatprep.subr.mxu0 0.0
    %189 = vmatpush1.xpose.msra.mxu0 0.0
    %190 = vmatprep.subr.mxu0 0.0
    %191 = vmatpush1.xpose.msra.mxu0 0.0
    %192 = vmatprep.subr.mxu0 0.0
    %193 = vmatpush1.xpose.msra.mxu0 0.0
    %194 = vmatprep.subr.mxu0 0.0
    %195 = vmatpush1.xpose.msra.mxu0 0.0
    %196 = vmatprep.subr.mxu0 0.0
    %197 = vmatpush1.xpose.msra.mxu0 0.0
    %198 = vmatprep.subr.mxu0 0.0
    %199 = vmatpush1.xpose.msra.mxu0 0.0
    %200 = vmatprep.subr.mxu0 0.0
    %201 = vmatpush1.xpose.msra.mxu0 0.0
    %202 = vmatprep.subr.mxu0 0.0
    %203 = vmatpush1.xpose.msra.mxu0 0.0
    %204 = vmatprep.subr.mxu0 0.0
    %205 = vmatpush1.xpose.msra.mxu0 0.0
    %206 = vmatprep.subr.mxu0 0.0
    %207 = vmatpush1.xpose.msra.mxu0 0.0
    %208 = vmatprep.subr.mxu0 0.0
    %209 = vmatpush1.xpose.msra.mxu0 0.0
    %210 = vmatprep.subr.mxu0 0.0
    %211 = vmatpush1.xpose.msra.mxu0 %v178
    %212 = vmatprep.subr.mxu0 0.0
    %213 = vmatpush2.xpose.msra.mxu0 0.0
    %214 = vmatprep.subr.mxu0 0.0
    %215 = vmatpush2.xpose.msra.mxu0 0.0
    %216 = vmatprep.subr.mxu0 0.0
    %217 = vmatpush2.xpose.msra.mxu0 0.0
    %218 = vmatprep.subr.mxu0 0.0
    %219 = vmatpush2.xpose.msra.mxu0 0.0
    %220 = vmatprep.subr.mxu0 0.0
    %221 = vmatpush2.xpose.msra.mxu0 0.0
    %222 = vmatprep.subr.mxu0 0.0
    %223 = vmatpush2.xpose.msra.mxu0 0.0
    %224 = vmatprep.subr.mxu0 0.0
    %225 = vmatpush2.xpose.msra.mxu0 0.0
    %226 = vmatprep.subr.mxu0 0.0
    %227 = vmatpush2.xpose.msra.mxu0 0.0
    %228 = vmatprep.subr.mxu0 0.0
    %229 = vmatpush2.xpose.msra.mxu0 0.0
    %230 = vmatprep.subr.mxu0 0.0
    %231 = vmatpush2.xpose.msra.mxu0 0.0
    %232 = vmatprep.subr.mxu0 0.0
    %233 = vmatpush2.xpose.msra.mxu0 0.0
    %234 = vmatprep.subr.mxu0 0.0
    %235 = vmatpush2.xpose.msra.mxu0 0.0
    %236 = vmatprep.subr.mxu0 0.0
    %237 = vmatpush2.xpose.msra.mxu0 0.0
    %238 = vmatprep.subr.mxu0 0.0
    %239 = vmatpush2.xpose.msra.mxu0 0.0
    %240 = vmatprep.subr.mxu0 0.0
    %241 = vmatpush2.xpose.msra.mxu0 0.0
    %242 = vmatprep.subr.mxu0 0.0
    %243 = vmatpush2.xpose.msra.mxu0 0.0
    %244 = vmatprep.mubr.f32.mxu0 0.0
    %245 = vmatmul.mubr.f32.gmra.mxu0 %v176
    %v246 = vpop.f32.mrf.mxu0
    %v247 = vadd.f32 0.0, %v246
    %v248 = vpop.f32.mrf.mxu0
    %249 = vdwg.mxu0
    %v250 = vsel %vm164, -3.4028235e+38, %v247
    %v251 = vsel %vm175, %v250, -inf
    %252 = vmax.xlane.f32.xlu0 %v251
    %v253 = vpop.xlane.xlu0 %252
    %v254 = vsub.f32 %v250, %v253
    %v255 = vmul.f32 %v254, 1.442695
    %v256 = vpow.pop %v255
    %v257 = vsel %vm175, %v256, 0.0
    %258 = vadd.xlane.f32.xlu0 %v257
    %v259 = vpop.xlane.xlu0 %258
    %v260 = vrcp.pop %v259
    %v261 = vmul.f32 %v256, %v260
    %v263 = vsel %vm175, %v261, 0
    %265 = vmatprep.subr.mxu0 0.0
    %266 = vmatpush1.msra.mxu0 0.0
    %267 = vmatprep.subr.mxu0 0.0
    %268 = vmatpush1.msra.mxu0 0.0
    %269 = vmatprep.subr.mxu0 0.0
    %270 = vmatpush1.msra.mxu0 0.0
    %271 = vmatprep.subr.mxu0 0.0
    %272 = vmatpush1.msra.mxu0 0.0
    %273 = vmatprep.subr.mxu0 0.0
    %274 = vmatpush1.msra.mxu0 0.0
    %275 = vmatprep.subr.mxu0 0.0
    %276 = vmatpush1.msra.mxu0 0.0
    %277 = vmatprep.subr.mxu0 0.0
    %278 = vmatpush1.msra.mxu0 0.0
    %279 = vmatprep.subr.mxu0 0.0
    %280 = vmatpush1.msra.mxu0 0.0
    %281 = vmatprep.subr.mxu0 0.0
    %282 = vmatpush1.msra.mxu0 0.0
    %283 = vmatprep.subr.mxu0 0.0
    %284 = vmatpush1.msra.mxu0 0.0
    %285 = vmatprep.subr.mxu0 0.0
    %286 = vmatpush1.msra.mxu0 0.0
    %287 = vmatprep.subr.mxu0 0.0
    %288 = vmatpush1.msra.mxu0 0.0
    %289 = vmatprep.subr.mxu0 0.0
    %290 = vmatpush1.msra.mxu0 0.0
    %291 = vmatprep.subr.mxu0 0.0
    %292 = vmatpush1.msra.mxu0 0.0
    %293 = vmatprep.subr.mxu0 0.0
    %294 = vmatpush1.msra.mxu0 0.0
    %295 = vmatprep.subr.mxu0 0.0
    %296 = vmatpush1.msra.mxu0 %v171
    %297 = vmatprep.subr.mxu0 0.0
    %298 = vmatpush2.msra.mxu0 0.0
    %299 = vmatprep.subr.mxu0 0.0
    %300 = vmatpush2.msra.mxu0 0.0
    %301 = vmatprep.subr.mxu0 0.0
    %302 = vmatpush2.msra.mxu0 0.0
    %303 = vmatprep.subr.mxu0 0.0
    %304 = vmatpush2.msra.mxu0 0.0
    %305 = vmatprep.subr.mxu0 0.0
    %306 = vmatpush2.msra.mxu0 0.0
    %307 = vmatprep.subr.mxu0 0.0
    %308 = vmatpush2.msra.mxu0 0.0
    %309 = vmatprep.subr.mxu0 0.0
    %310 = vmatpush2.msra.mxu0 0.0
    %311 = vmatprep.subr.mxu0 0.0
    %312 = vmatpush2.msra.mxu0 0.0
    %313 = vmatprep.subr.mxu0 0.0
    %314 = vmatpush2.msra.mxu0 0.0
    %315 = vmatprep.subr.mxu0 0.0
    %316 = vmatpush2.msra.mxu0 0.0
    %317 = vmatprep.subr.mxu0 0.0
    %318 = vmatpush2.msra.mxu0 0.0
    %319 = vmatprep.subr.mxu0 0.0
    %320 = vmatpush2.msra.mxu0 0.0
    %321 = vmatprep.subr.mxu0 0.0
    %322 = vmatpush2.msra.mxu0 0.0
    %323 = vmatprep.subr.mxu0 0.0
    %324 = vmatpush2.msra.mxu0 0.0
    %325 = vmatprep.subr.mxu0 0.0
    %326 = vmatpush2.msra.mxu0 0.0
    %327 = vmatprep.subr.mxu0 0.0
    %328 = vmatpush2.msra.mxu0 0.0
    %329 = vmatprep.mubr.f32.mxu0 0.0
    %330 = vmatmul.mubr.f32.gmra.mxu0 %v263
    %v331 = vpop.f32.mrf.mxu0
    %v332 = vadd.f32 0.0, %v331
    %v333 = vpop.f32.mrf.mxu0
    %334 = vdwg.mxu0
    %335 = vrot.lane.b32.xlu0 %v152, 120
    %v336 = vpop.permute.xlu0 %335
    %337 = vrot.lane.b32.xlu0 %v152, 88
    %v338 = vpop.permute.xlu0 %337
    %v339 = vsel %vm175, %v336, 0
    %v341 = vsel %vm175, %v338, 0
    %343 = vmatprep.subr.mxu0 0.0
    %344 = vmatpush1.xpose.msra.mxu0 0.0
    %345 = vmatprep.subr.mxu0 0.0
    %346 = vmatpush1.xpose.msra.mxu0 0.0
    %347 = vmatprep.subr.mxu0 0.0
    %348 = vmatpush1.xpose.msra.mxu0 0.0
    %349 = vmatprep.subr.mxu0 0.0
    %350 = vmatpush1.xpose.msra.mxu0 0.0
    %351 = vmatprep.subr.mxu0 0.0
    %352 = vmatpush1.xpose.msra.mxu0 0.0
    %353 = vmatprep.subr.mxu0 0.0
    %354 = vmatpush1.xpose.msra.mxu0 0.0
    %355 = vmatprep.subr.mxu0 0.0
    %356 = vmatpush1.xpose.msra.mxu0 0.0
    %357 = vmatprep.subr.mxu0 0.0
    %358 = vmatpush1.xpose.msra.mxu0 0.0
    %359 = vmatprep.subr.mxu0 0.0
    %360 = vmatpush1.xpose.msra.mxu0 0.0
    %361 = vmatprep.subr.mxu0 0.0
    %362 = vmatpush1.xpose.msra.mxu0 0.0
    %363 = vmatprep.subr.mxu0 0.0
    %364 = vmatpush1.xpose.msra.mxu0 0.0
    %365 = vmatprep.subr.mxu0 0.0
    %366 = vmatpush1.xpose.msra.mxu0 0.0
    %367 = vmatprep.subr.mxu0 0.0
    %368 = vmatpush1.xpose.msra.mxu0 0.0
    %369 = vmatprep.subr.mxu0 0.0
    %370 = vmatpush1.xpose.msra.mxu0 0.0
    %371 = vmatprep.subr.mxu0 0.0
    %372 = vmatpush1.xpose.msra.mxu0 0.0
    %373 = vmatprep.subr.mxu0 0.0
    %374 = vmatpush1.xpose.msra.mxu0 %v341
    %375 = vmatprep.subr.mxu0 0.0
    %376 = vmatpush2.xpose.msra.mxu0 0.0
    %377 = vmatprep.subr.mxu0 0.0
    %378 = vmatpush2.xpose.msra.mxu0 0.0
    %379 = vmatprep.subr.mxu0 0.0
    %380 = vmatpush2.xpose.msra.mxu0 0.0
    %381 = vmatprep.subr.mxu0 0.0
    %382 = vmatpush2.xpose.msra.mxu0 0.0
    %383 = vmatprep.subr.mxu0 0.0
    %384 = vmatpush2.xpose.msra.mxu0 0.0
    %385 = vmatprep.subr.mxu0 0.0
    %386 = vmatpush2.xpose.msra.mxu0 0.0
    %387 = vmatprep.subr.mxu0 0.0
    %388 = vmatpush2.xpose.msra.mxu0 0.0
    %389 = vmatprep.subr.mxu0 0.0
    %390 = vmatpush2.xpose.msra.mxu0 0.0
    %391 = vmatprep.subr.mxu0 0.0
    %392 = vmatpush2.xpose.msra.mxu0 0.0
    %393 = vmatprep.subr.mxu0 0.0
    %394 = vmatpush2.xpose.msra.mxu0 0.0
    %395 = vmatprep.subr.mxu0 0.0
    %396 = vmatpush2.xpose.msra.mxu0 0.0
    %397 = vmatprep.subr.mxu0 0.0
    %398 = vmatpush2.xpose.msra.mxu0 0.0
    %399 = vmatprep.subr.mxu0 0.0
    %400 = vmatpush2.xpose.msra.mxu0 0.0
    %401 = vmatprep.subr.mxu0 0.0
    %402 = vmatpush2.xpose.msra.mxu0 0.0
    %403 = vmatprep.subr.mxu0 0.0
    %404 = vmatpush2.xpose.msra.mxu0 0.0
    %405 = vmatprep.subr.mxu0 0.0
    %406 = vmatpush2.xpose.msra.mxu0 0.0
    %407 = vmatprep.mubr.f32.mxu0 0.0
    %408 = vmatmul.mubr.f32.gmra.mxu0 %v339
    %v409 = vpop.f32.mrf.mxu0
    %v410 = vadd.f32 0.0, %v409
    %v411 = vpop.f32.mrf.mxu0
    %412 = vdwg.mxu0
    %v413 = vsel %vm164, -3.4028235e+38, %v410
    %v414 = vsel %vm175, %v413, -inf
    %415 = vmax.xlane.f32.xlu0 %v414
    %v416 = vpop.xlane.xlu0 %415
    %v417 = vsub.f32 %v413, %v416
    %v418 = vmul.f32 %v417, 1.442695
    %v419 = vpow.pop %v418
    %v420 = vsel %vm175, %v419, 0.0
    %421 = vadd.xlane.f32.xlu0 %v420
    %v422 = vpop.xlane.xlu0 %421
    %v423 = vrcp.pop %v422
    %v424 = vmul.f32 %v419, %v423
    %425 = vrot.lane.b32.xlu0 %v152, 56
    %v426 = vpop.permute.xlu0 %425
    %v429 = vsel %vm175, %v424, 0
    %431 = vmatprep.subr.mxu0 0.0
    %432 = vmatpush1.msra.mxu0 0.0
    %433 = vmatprep.subr.mxu0 0.0
    %434 = vmatpush1.msra.mxu0 0.0
    %435 = vmatprep.subr.mxu0 0.0
    %436 = vmatpush1.msra.mxu0 0.0
    %437 = vmatprep.subr.mxu0 0.0
    %438 = vmatpush1.msra.mxu0 0.0
    %439 = vmatprep.subr.mxu0 0.0
    %440 = vmatpush1.msra.mxu0 0.0
    %441 = vmatprep.subr.mxu0 0.0
    %442 = vmatpush1.msra.mxu0 0.0
    %443 = vmatprep.subr.mxu0 0.0
    %444 = vmatpush1.msra.mxu0 0.0
    %445 = vmatprep.subr.mxu0 0.0
    %446 = vmatpush1.msra.mxu0 0.0
    %447 = vmatprep.subr.mxu0 0.0
    %448 = vmatpush1.msra.mxu0 0.0
    %449 = vmatprep.subr.mxu0 0.0
    %450 = vmatpush1.msra.mxu0 0.0
    %451 = vmatprep.subr.mxu0 0.0
    %452 = vmatpush1.msra.mxu0 0.0
    %453 = vmatprep.subr.mxu0 0.0
    %454 = vmatpush1.msra.mxu0 0.0
    %455 = vmatprep.subr.mxu0 0.0
    %456 = vmatpush1.msra.mxu0 0.0
    %457 = vmatprep.subr.mxu0 0.0
    %458 = vmatpush1.msra.mxu0 0.0
    %459 = vmatprep.subr.mxu0 0.0
    %460 = vmatpush1.msra.mxu0 0.0
    %461 = vmatprep.subr.mxu0 0.0
    %462 = vmatpush1.msra.mxu0 %v426
    %463 = vmatprep.subr.mxu0 0.0
    %464 = vmatpush2.msra.mxu0 0.0
    %465 = vmatprep.subr.mxu0 0.0
    %466 = vmatpush2.msra.mxu0 0.0
    %467 = vmatprep.subr.mxu0 0.0
    %468 = vmatpush2.msra.mxu0 0.0
    %469 = vmatprep.subr.mxu0 0.0
    %470 = vmatpush2.msra.mxu0 0.0
    %471 = vmatprep.subr.mxu0 0.0
    %472 = vmatpush2.msra.mxu0 0.0
    %473 = vmatprep.subr.mxu0 0.0
    %474 = vmatpush2.msra.mxu0 0.0
    %475 = vmatprep.subr.mxu0 0.0
    %476 = vmatpush2.msra.mxu0 0.0
    %477 = vmatprep.subr.mxu0 0.0
    %478 = vmatpush2.msra.mxu0 0.0
    %479 = vmatprep.subr.mxu0 0.0
    %480 = vmatpush2.msra.mxu0 0.0
    %481 = vmatprep.subr.mxu0 0.0
    %482 = vmatpush2.msra.mxu0 0.0
    %483 = vmatprep.subr.mxu0 0.0
    %484 = vmatpush2.msra.mxu0 0.0
    %485 = vmatprep.subr.mxu0 0.0
    %486 = vmatpush2.msra.mxu0 0.0
    %487 = vmatprep.subr.mxu0 0.0
    %488 = vmatpush2.msra.mxu0 0.0
    %489 = vmatprep.subr.mxu0 0.0
    %490 = vmatpush2.msra.mxu0 0.0
    %491 = vmatprep.subr.mxu0 0.0
    %492 = vmatpush2.msra.mxu0 0.0
    %493 = vmatprep.subr.mxu0 0.0
    %494 = vmatpush2.msra.mxu0 0.0
    %495 = vmatprep.mubr.f32.mxu0 0.0
    %496 = vmatmul.mubr.f32.gmra.mxu0 %v429
    %v497 = vpop.f32.mrf.mxu0
    %v498 = vadd.f32 0.0, %v497
    %v499 = vpop.f32.mrf.mxu0
    %500 = vdwg.mxu0
    %501 = vrot.lane.b32.xlu0 %v152, 112
    %v502 = vpop.permute.xlu0 %501
    %503 = vrot.lane.b32.xlu0 %v152, 80
    %v504 = vpop.permute.xlu0 %503
    %v505 = vsel %vm175, %v502, 0
    %v507 = vsel %vm175, %v504, 0
    %509 = vmatprep.subr.mxu0 0.0
    %510 = vmatpush1.xpose.msra.mxu0 0.0
    %511 = vmatprep.subr.mxu0 0.0
    %512 = vmatpush1.xpose.msra.mxu0 0.0
    %513 = vmatprep.subr.mxu0 0.0
    %514 = vmatpush1.xpose.msra.mxu0 0.0
    %515 = vmatprep.subr.mxu0 0.0
    %516 = vmatpush1.xpose.msra.mxu0 0.0
    %517 = vmatprep.subr.mxu0 0.0
    %518 = vmatpush1.xpose.msra.mxu0 0.0
    %519 = vmatprep.subr.mxu0 0.0
    %520 = vmatpush1.xpose.msra.mxu0 0.0
    %521 = vmatprep.subr.mxu0 0.0
    %522 = vmatpush1.xpose.msra.mxu0 0.0
    %523 = vmatprep.subr.mxu0 0.0
    %524 = vmatpush1.xpose.msra.mxu0 0.0
    %525 = vmatprep.subr.mxu0 0.0
    %526 = vmatpush1.xpose.msra.mxu0 0.0
    %527 = vmatprep.subr.mxu0 0.0
    %528 = vmatpush1.xpose.msra.mxu0 0.0
    %529 = vmatprep.subr.mxu0 0.0
    %530 = vmatpush1.xpose.msra.mxu0 0.0
    %531 = vmatprep.subr.mxu0 0.0
    %532 = vmatpush1.xpose.msra.mxu0 0.0
    %533 = vmatprep.subr.mxu0 0.0
    %534 = vmatpush1.xpose.msra.mxu0 0.0
    %535 = vmatprep.subr.mxu0 0.0
    %536 = vmatpush1.xpose.msra.mxu0 0.0
    %537 = vmatprep.subr.mxu0 0.0
    %538 = vmatpush1.xpose.msra.mxu0 0.0
    %539 = vmatprep.subr.mxu0 0.0
    %540 = vmatpush1.xpose.msra.mxu0 %v507
    %541 = vmatprep.subr.mxu0 0.0
    %542 = vmatpush2.xpose.msra.mxu0 0.0
    %543 = vmatprep.subr.mxu0 0.0
    %544 = vmatpush2.xpose.msra.mxu0 0.0
    %545 = vmatprep.subr.mxu0 0.0
    %546 = vmatpush2.xpose.msra.mxu0 0.0
    %547 = vmatprep.subr.mxu0 0.0
    %548 = vmatpush2.xpose.msra.mxu0 0.0
    %549 = vmatprep.subr.mxu0 0.0
    %550 = vmatpush2.xpose.msra.mxu0 0.0
    %551 = vmatprep.subr.mxu0 0.0
    %552 = vmatpush2.xpose.msra.mxu0 0.0
    %553 = vmatprep.subr.mxu0 0.0
    %554 = vmatpush2.xpose.msra.mxu0 0.0
    %555 = vmatprep.subr.mxu0 0.0
    %556 = vmatpush2.xpose.msra.mxu0 0.0
    %557 = vmatprep.subr.mxu0 0.0
    %558 = vmatpush2.xpose.msra.mxu0 0.0
    %559 = vmatprep.subr.mxu0 0.0
    %560 = vmatpush2.xpose.msra.mxu0 0.0
    %561 = vmatprep.subr.mxu0 0.0
    %562 = vmatpush2.xpose.msra.mxu0 0.0
    %563 = vmatprep.subr.mxu0 0.0
    %564 = vmatpush2.xpose.msra.mxu0 0.0
    %565 = vmatprep.subr.mxu0 0.0
    %566 = vmatpush2.xpose.msra.mxu0 0.0
    %567 = vmatprep.subr.mxu0 0.0
    %568 = vmatpush2.xpose.msra.mxu0 0.0
    %569 = vmatprep.subr.mxu0 0.0
    %570 = vmatpush2.xpose.msra.mxu0 0.0
    %571 = vmatprep.subr.mxu0 0.0
    %572 = vmatpush2.xpose.msra.mxu0 0.0
    %573 = vmatprep.mubr.f32.mxu0 0.0
    %574 = vmatmul.mubr.f32.gmra.mxu0 %v505
    %v575 = vpop.f32.mrf.mxu0
    %v576 = vadd.f32 0.0, %v575
    %v577 = vpop.f32.mrf.mxu0
    %578 = vdwg.mxu0
    %v579 = vsel %vm164, -3.4028235e+38, %v576
    %v580 = vsel %vm175, %v579, -inf
    %581 = vmax.xlane.f32.xlu0 %v580
    %v582 = vpop.xlane.xlu0 %581
    %v583 = vsub.f32 %v579, %v582
    %v584 = vmul.f32 %v583, 1.442695
    %v585 = vpow.pop %v584
    %v586 = vsel %vm175, %v585, 0.0
    %587 = vadd.xlane.f32.xlu0 %v586
    %v588 = vpop.xlane.xlu0 %587
    %v589 = vrcp.pop %v588
    %v590 = vmul.f32 %v585, %v589
    %591 = vrot.lane.b32.xlu0 %v152, 48
    %v592 = vpop.permute.xlu0 %591
    %v595 = vsel %vm175, %v590, 0
    %597 = vmatprep.subr.mxu0 0.0
    %598 = vmatpush1.msra.mxu0 0.0
    %599 = vmatprep.subr.mxu0 0.0
    %600 = vmatpush1.msra.mxu0 0.0
    %601 = vmatprep.subr.mxu0 0.0
    %602 = vmatpush1.msra.mxu0 0.0
    %603 = vmatprep.subr.mxu0 0.0
    %604 = vmatpush1.msra.mxu0 0.0
    %605 = vmatprep.subr.mxu0 0.0
    %606 = vmatpush1.msra.mxu0 0.0
    %607 = vmatprep.subr.mxu0 0.0
    %608 = vmatpush1.msra.mxu0 0.0
    %609 = vmatprep.subr.mxu0 0.0
    %610 = vmatpush1.msra.mxu0 0.0
    %611 = vmatprep.subr.mxu0 0.0
    %612 = vmatpush1.msra.mxu0 0.0
    %613 = vmatprep.subr.mxu0 0.0
    %614 = vmatpush1.msra.mxu0 0.0
    %615 = vmatprep.subr.mxu0 0.0
    %616 = vmatpush1.msra.mxu0 0.0
    %617 = vmatprep.subr.mxu0 0.0
    %618 = vmatpush1.msra.mxu0 0.0
    %619 = vmatprep.subr.mxu0 0.0
    %620 = vmatpush1.msra.mxu0 0.0
    %621 = vmatprep.subr.mxu0 0.0
    %622 = vmatpush1.msra.mxu0 0.0
    %623 = vmatprep.subr.mxu0 0.0
    %624 = vmatpush1.msra.mxu0 0.0
    %625 = vmatprep.subr.mxu0 0.0
    %626 = vmatpush1.msra.mxu0 0.0
    %627 = vmatprep.subr.mxu0 0.0
    %628 = vmatpush1.msra.mxu0 %v592
    %629 = vmatprep.subr.mxu0 0.0
    %630 = vmatpush2.msra.mxu0 0.0
    %631 = vmatprep.subr.mxu0 0.0
    %632 = vmatpush2.msra.mxu0 0.0
    %633 = vmatprep.subr.mxu0 0.0
    %634 = vmatpush2.msra.mxu0 0.0
    %635 = vmatprep.subr.mxu0 0.0
    %636 = vmatpush2.msra.mxu0 0.0
    %637 = vmatprep.subr.mxu0 0.0
    %638 = vmatpush2.msra.mxu0 0.0
    %639 = vmatprep.subr.mxu0 0.0
    %640 = vmatpush2.msra.mxu0 0.0
    %641 = vmatprep.subr.mxu0 0.0
    %642 = vmatpush2.msra.mxu0 0.0
    %643 = vmatprep.subr.mxu0 0.0
    %644 = vmatpush2.msra.mxu0 0.0
    %645 = vmatprep.subr.mxu0 0.0
    %646 = vmatpush2.msra.mxu0 0.0
    %647 = vmatprep.subr.mxu0 0.0
    %648 = vmatpush2.msra.mxu0 0.0
    %649 = vmatprep.subr.mxu0 0.0
    %650 = vmatpush2.msra.mxu0 0.0
    %651 = vmatprep.subr.mxu0 0.0
    %652 = vmatpush2.msra.mxu0 0.0
    %653 = vmatprep.subr.mxu0 0.0
    %654 = vmatpush2.msra.mxu0 0.0
    %655 = vmatprep.subr.mxu0 0.0
    %656 = vmatpush2.msra.mxu0 0.0
    %657 = vmatprep.subr.mxu0 0.0
    %658 = vmatpush2.msra.mxu0 0.0
    %659 = vmatprep.subr.mxu0 0.0
    %660 = vmatpush2.msra.mxu0 0.0
    %661 = vmatprep.mubr.f32.mxu0 0.0
    %662 = vmatmul.mubr.f32.gmra.mxu0 %v595
    %v663 = vpop.f32.mrf.mxu0
    %v664 = vadd.f32 0.0, %v663
    %v665 = vpop.f32.mrf.mxu0
    %666 = vdwg.mxu0
    %667 = vrot.lane.b32.xlu0 %v152, 104
    %v668 = vpop.permute.xlu0 %667
    %669 = vrot.lane.b32.xlu0 %v152, 72
    %v670 = vpop.permute.xlu0 %669
    %v671 = vsel %vm175, %v668, 0
    %v673 = vsel %vm175, %v670, 0
    %675 = vmatprep.subr.mxu0 0.0
    %676 = vmatpush1.xpose.msra.mxu0 0.0
    %677 = vmatprep.subr.mxu0 0.0
    %678 = vmatpush1.xpose.msra.mxu0 0.0
    %679 = vmatprep.subr.mxu0 0.0
    %680 = vmatpush1.xpose.msra.mxu0 0.0
    %681 = vmatprep.subr.mxu0 0.0
    %682 = vmatpush1.xpose.msra.mxu0 0.0
    %683 = vmatprep.subr.mxu0 0.0
    %684 = vmatpush1.xpose.msra.mxu0 0.0
    %685 = vmatprep.subr.mxu0 0.0
    %686 = vmatpush1.xpose.msra.mxu0 0.0
    %687 = vmatprep.subr.mxu0 0.0
    %688 = vmatpush1.xpose.msra.mxu0 0.0
    %689 = vmatprep.subr.mxu0 0.0
    %690 = vmatpush1.xpose.msra.mxu0 0.0
    %691 = vmatprep.subr.mxu0 0.0
    %692 = vmatpush1.xpose.msra.mxu0 0.0
    %693 = vmatprep.subr.mxu0 0.0
    %694 = vmatpush1.xpose.msra.mxu0 0.0
    %695 = vmatprep.subr.mxu0 0.0
    %696 = vmatpush1.xpose.msra.mxu0 0.0
    %697 = vmatprep.subr.mxu0 0.0
    %698 = vmatpush1.xpose.msra.mxu0 0.0
    %699 = vmatprep.subr.mxu0 0.0
    %700 = vmatpush1.xpose.msra.mxu0 0.0
    %701 = vmatprep.subr.mxu0 0.0
    %702 = vmatpush1.xpose.msra.mxu0 0.0
    %703 = vmatprep.subr.mxu0 0.0
    %704 = vmatpush1.xpose.msra.mxu0 0.0
    %705 = vmatprep.subr.mxu0 0.0
    %706 = vmatpush1.xpose.msra.mxu0 %v673
    %707 = vmatprep.subr.mxu0 0.0
    %708 = vmatpush2.xpose.msra.mxu0 0.0
    %709 = vmatprep.subr.mxu0 0.0
    %710 = vmatpush2.xpose.msra.mxu0 0.0
    %711 = vmatprep.subr.mxu0 0.0
    %712 = vmatpush2.xpose.msra.mxu0 0.0
    %713 = vmatprep.subr.mxu0 0.0
    %714 = vmatpush2.xpose.msra.mxu0 0.0
    %715 = vmatprep.subr.mxu0 0.0
    %716 = vmatpush2.xpose.msra.mxu0 0.0
    %717 = vmatprep.subr.mxu0 0.0
    %718 = vmatpush2.xpose.msra.mxu0 0.0
    %719 = vmatprep.subr.mxu0 0.0
    %720 = vmatpush2.xpose.msra.mxu0 0.0
    %721 = vmatprep.subr.mxu0 0.0
    %722 = vmatpush2.xpose.msra.mxu0 0.0
    %723 = vmatprep.subr.mxu0 0.0
    %724 = vmatpush2.xpose.msra.mxu0 0.0
    %725 = vmatprep.subr.mxu0 0.0
    %726 = vmatpush2.xpose.msra.mxu0 0.0
    %727 = vmatprep.subr.mxu0 0.0
    %728 = vmatpush2.xpose.msra.mxu0 0.0
    %729 = vmatprep.subr.mxu0 0.0
    %730 = vmatpush2.xpose.msra.mxu0 0.0
    %731 = vmatprep.subr.mxu0 0.0
    %732 = vmatpush2.xpose.msra.mxu0 0.0
    %733 = vmatprep.subr.mxu0 0.0
    %734 = vmatpush2.xpose.msra.mxu0 0.0
    %735 = vmatprep.subr.mxu0 0.0
    %736 = vmatpush2.xpose.msra.mxu0 0.0
    %737 = vmatprep.subr.mxu0 0.0
    %738 = vmatpush2.xpose.msra.mxu0 0.0
    %739 = vmatprep.mubr.f32.mxu0 0.0
    %740 = vmatmul.mubr.f32.gmra.mxu0 %v671
    %v741 = vpop.f32.mrf.mxu0
    %v742 = vadd.f32 0.0, %v741
    %v743 = vpop.f32.mrf.mxu0
    %744 = vdwg.mxu0
    %v745 = vsel %vm164, -3.4028235e+38, %v742
    %v746 = vsel %vm175, %v745, -inf
    %747 = vmax.xlane.f32.xlu0 %v746
    %v748 = vpop.xlane.xlu0 %747
    %v749 = vsub.f32 %v745, %v748
    %v750 = vmul.f32 %v749, 1.442695
    %v751 = vpow.pop %v750
    %v752 = vsel %vm175, %v751, 0.0
    %753 = vadd.xlane.f32.xlu0 %v752
    %v754 = vpop.xlane.xlu0 %753
    %v755 = vrcp.pop %v754
    %v756 = vmul.f32 %v751, %v755
    %757 = vrot.lane.b32.xlu0 %v152, 40
    %v758 = vpop.permute.xlu0 %757
    %v761 = vsel %vm175, %v756, 0
    %763 = vmatprep.subr.mxu0 0.0
    %764 = vmatpush1.msra.mxu0 0.0
    %765 = vmatprep.subr.mxu0 0.0
    %766 = vmatpush1.msra.mxu0 0.0
    %767 = vmatprep.subr.mxu0 0.0
    %768 = vmatpush1.msra.mxu0 0.0
    %769 = vmatprep.subr.mxu0 0.0
    %770 = vmatpush1.msra.mxu0 0.0
    %771 = vmatprep.subr.mxu0 0.0
    %772 = vmatpush1.msra.mxu0 0.0
    %773 = vmatprep.subr.mxu0 0.0
    %774 = vmatpush1.msra.mxu0 0.0
    %775 = vmatprep.subr.mxu0 0.0
    %776 = vmatpush1.msra.mxu0 0.0
    %777 = vmatprep.subr.mxu0 0.0
    %778 = vmatpush1.msra.mxu0 0.0
    %779 = vmatprep.subr.mxu0 0.0
    %780 = vmatpush1.msra.mxu0 0.0
    %781 = vmatprep.subr.mxu0 0.0
    %782 = vmatpush1.msra.mxu0 0.0
    %783 = vmatprep.subr.mxu0 0.0
    %784 = vmatpush1.msra.mxu0 0.0
    %785 = vmatprep.subr.mxu0 0.0
    %786 = vmatpush1.msra.mxu0 0.0
    %787 = vmatprep.subr.mxu0 0.0
    %788 = vmatpush1.msra.mxu0 0.0
    %789 = vmatprep.subr.mxu0 0.0
    %790 = vmatpush1.msra.mxu0 0.0
    %791 = vmatprep.subr.mxu0 0.0
    %792 = vmatpush1.msra.mxu0 0.0
    %793 = vmatprep.subr.mxu0 0.0
    %794 = vmatpush1.msra.mxu0 %v758
    %795 = vmatprep.subr.mxu0 0.0
    %796 = vmatpush2.msra.mxu0 0.0
    %797 = vmatprep.subr.mxu0 0.0
    %798 = vmatpush2.msra.mxu0 0.0
    %799 = vmatprep.subr.mxu0 0.0
    %800 = vmatpush2.msra.mxu0 0.0
    %801 = vmatprep.subr.mxu0 0.0
    %802 = vmatpush2.msra.mxu0 0.0
    %803 = vmatprep.subr.mxu0 0.0
    %804 = vmatpush2.msra.mxu0 0.0
    %805 = vmatprep.subr.mxu0 0.0
    %806 = vmatpush2.msra.mxu0 0.0
    %807 = vmatprep.subr.mxu0 0.0
    %808 = vmatpush2.msra.mxu0 0.0
    %809 = vmatprep.subr.mxu0 0.0
    %810 = vmatpush2.msra.mxu0 0.0
    %811 = vmatprep.subr.mxu0 0.0
    %812 = vmatpush2.msra.mxu0 0.0
    %813 = vmatprep.subr.mxu0 0.0
    %814 = vmatpush2.msra.mxu0 0.0
    %815 = vmatprep.subr.mxu0 0.0
    %816 = vmatpush2.msra.mxu0 0.0
    %817 = vmatprep.subr.mxu0 0.0
    %818 = vmatpush2.msra.mxu0 0.0
    %819 = vmatprep.subr.mxu0 0.0
    %820 = vmatpush2.msra.mxu0 0.0
    %821 = vmatprep.subr.mxu0 0.0
    %822 = vmatpush2.msra.mxu0 0.0
    %823 = vmatprep.subr.mxu0 0.0
    %824 = vmatpush2.msra.mxu0 0.0
    %825 = vmatprep.subr.mxu0 0.0
    %826 = vmatpush2.msra.mxu0 0.0
    %827 = vmatprep.mubr.f32.mxu0 0.0
    %828 = vmatmul.mubr.f32.gmra.mxu0 %v761
    %v829 = vpop.f32.mrf.mxu0
    %v830 = vadd.f32 0.0, %v829
    %v831 = vpop.f32.mrf.mxu0
    %832 = vdwg.mxu0
    %834 = vrot.lane.b32.xlu0 %v498, 8
    %v835 = vpop.permute.xlu0 %834
    %838 = vrot.lane.b32.xlu0 %v664, 16
    %v839 = vpop.permute.xlu0 %838
    %842 = vrot.lane.b32.xlu0 %v830, 24
    %v843 = vpop.permute.xlu0 %842
    %v845 = vsel %vm175, %v332, %v835
    %vm846 = vcmask 130048
    %v847 = vsel %vm846, %v845, %v839
    %vm848 = vcmask 195584
    %v849 = vsel %vm848, %v847, %v843
    %851 = vrot.lane.b32.xlu0 %v157, 96
    %v852 = vpop.permute.xlu0 %851
    %s854 = scalar_lea.vmem [#allocation9], 16
    %855 = vst.msk [vmem:[%s854] sm:$0xff] %vm78, %v852
    %856 = vrot.lane.b32.xlu0 %v157, 64
    %v857 = vpop.permute.xlu0 %856
    %s859 = scalar_lea.vmem [#allocation9], 24
    %860 = vst.msk [vmem:[%s859] sm:$0xff] %vm78, %v857
    %v861 = vsel %vm175, %v157, 0
    %v863 = vsel %vm175, %v852, 0
    %865 = vmatprep.subr.mxu0 0.0
    %866 = vmatpush1.xpose.msra.mxu0 0.0
    %867 = vmatprep.subr.mxu0 0.0
    %868 = vmatpush1.xpose.msra.mxu0 0.0
    %869 = vmatprep.subr.mxu0 0.0
    %870 = vmatpush1.xpose.msra.mxu0 0.0
    %871 = vmatprep.subr.mxu0 0.0
    %872 = vmatpush1.xpose.msra.mxu0 0.0
    %873 = vmatprep.subr.mxu0 0.0
    %874 = vmatpush1.xpose.msra.mxu0 0.0
    %875 = vmatprep.subr.mxu0 0.0
    %876 = vmatpush1.xpose.msra.mxu0 0.0
    %877 = vmatprep.subr.mxu0 0.0
    %878 = vmatpush1.xpose.msra.mxu0 0.0
    %879 = vmatprep.subr.mxu0 0.0
    %880 = vmatpush1.xpose.msra.mxu0 0.0
    %881 = vmatprep.subr.mxu0 0.0
    %882 = vmatpush1.xpose.msra.mxu0 0.0
    %883 = vmatprep.subr.mxu0 0.0
    %884 = vmatpush1.xpose.msra.mxu0 0.0
    %885 = vmatprep.subr.mxu0 0.0
    %886 = vmatpush1.xpose.msra.mxu0 0.0
    %887 = vmatprep.subr.mxu0 0.0
    %888 = vmatpush1.xpose.msra.mxu0 0.0
    %889 = vmatprep.subr.mxu0 0.0
    %890 = vmatpush1.xpose.msra.mxu0 0.0
    %891 = vmatprep.subr.mxu0 0.0
    %892 = vmatpush1.xpose.msra.mxu0 0.0
    %893 = vmatprep.subr.mxu0 0.0
    %894 = vmatpush1.xpose.msra.mxu0 0.0
    %895 = vmatprep.subr.mxu0 0.0
    %896 = vmatpush1.xpose.msra.mxu0 %v863
    %897 = vmatprep.subr.mxu0 0.0
    %898 = vmatpush2.xpose.msra.mxu0 0.0
    %899 = vmatprep.subr.mxu0 0.0
    %900 = vmatpush2.xpose.msra.mxu0 0.0
    %901 = vmatprep.subr.mxu0 0.0
    %902 = vmatpush2.xpose.msra.mxu0 0.0
    %903 = vmatprep.subr.mxu0 0.0
    %904 = vmatpush2.xpose.msra.mxu0 0.0
    %905 = vmatprep.subr.mxu0 0.0
    %906 = vmatpush2.xpose.msra.mxu0 0.0
    %907 = vmatprep.subr.mxu0 0.0
    %908 = vmatpush2.xpose.msra.mxu0 0.0
    %909 = vmatprep.subr.mxu0 0.0
    %910 = vmatpush2.xpose.msra.mxu0 0.0
    %911 = vmatprep.subr.mxu0 0.0
    %912 = vmatpush2.xpose.msra.mxu0 0.0
    %913 = vmatprep.subr.mxu0 0.0
    %914 = vmatpush2.xpose.msra.mxu0 0.0
    %915 = vmatprep.subr.mxu0 0.0
    %916 = vmatpush2.xpose.msra.mxu0 0.0
    %917 = vmatprep.subr.mxu0 0.0
    %918 = vmatpush2.xpose.msra.mxu0 0.0
    %919 = vmatprep.subr.mxu0 0.0
    %920 = vmatpush2.xpose.msra.mxu0 0.0
    %921 = vmatprep.subr.mxu0 0.0
    %922 = vmatpush2.xpose.msra.mxu0 0.0
    %923 = vmatprep.subr.mxu0 0.0
    %924 = vmatpush2.xpose.msra.mxu0 0.0
    %925 = vmatprep.subr.mxu0 0.0
    %926 = vmatpush2.xpose.msra.mxu0 0.0
    %927 = vmatprep.subr.mxu0 0.0
    %928 = vmatpush2.xpose.msra.mxu0 0.0
    %929 = vmatprep.mubr.f32.mxu0 0.0
    %930 = vmatmul.mubr.f32.gmra.mxu0 %v861
    %v931 = vpop.f32.mrf.mxu0
    %v932 = vadd.f32 0.0, %v931
    %v933 = vpop.f32.mrf.mxu0
    %934 = vdwg.mxu0
    %v935 = vsel %vm164, -3.4028235e+38, %v932
    %v936 = vsel %vm175, %v935, -inf
    %937 = vmax.xlane.f32.xlu0 %v936
    %v938 = vpop.xlane.xlu0 %937
    %v939 = vsub.f32 %v935, %v938
    %v940 = vmul.f32 %v939, 1.442695
    %v941 = vpow.pop %v940
    %v942 = vsel %vm175, %v941, 0.0
    %943 = vadd.xlane.f32.xlu0 %v942
    %v944 = vpop.xlane.xlu0 %943
    %v945 = vrcp.pop %v944
    %v946 = vmul.f32 %v941, %v945
    %v948 = vsel %vm175, %v946, 0
    %950 = vmatprep.subr.mxu0 0.0
    %951 = vmatpush1.msra.mxu0 0.0
    %952 = vmatprep.subr.mxu0 0.0
    %953 = vmatpush1.msra.mxu0 0.0
    %954 = vmatprep.subr.mxu0 0.0
    %955 = vmatpush1.msra.mxu0 0.0
    %956 = vmatprep.subr.mxu0 0.0
    %957 = vmatpush1.msra.mxu0 0.0
    %958 = vmatprep.subr.mxu0 0.0
    %959 = vmatpush1.msra.mxu0 0.0
    %960 = vmatprep.subr.mxu0 0.0
    %961 = vmatpush1.msra.mxu0 0.0
    %962 = vmatprep.subr.mxu0 0.0
    %963 = vmatpush1.msra.mxu0 0.0
    %964 = vmatprep.subr.mxu0 0.0
    %965 = vmatpush1.msra.mxu0 0.0
    %966 = vmatprep.subr.mxu0 0.0
    %967 = vmatpush1.msra.mxu0 0.0
    %968 = vmatprep.subr.mxu0 0.0
    %969 = vmatpush1.msra.mxu0 0.0
    %970 = vmatprep.subr.mxu0 0.0
    %971 = vmatpush1.msra.mxu0 0.0
    %972 = vmatprep.subr.mxu0 0.0
    %973 = vmatpush1.msra.mxu0 0.0
    %974 = vmatprep.subr.mxu0 0.0
    %975 = vmatpush1.msra.mxu0 0.0
    %976 = vmatprep.subr.mxu0 0.0
    %977 = vmatpush1.msra.mxu0 0.0
    %978 = vmatprep.subr.mxu0 0.0
    %979 = vmatpush1.msra.mxu0 0.0
    %980 = vmatprep.subr.mxu0 0.0
    %981 = vmatpush1.msra.mxu0 %v857
    %982 = vmatprep.subr.mxu0 0.0
    %983 = vmatpush2.msra.mxu0 0.0
    %984 = vmatprep.subr.mxu0 0.0
    %985 = vmatpush2.msra.mxu0 0.0
    %986 = vmatprep.subr.mxu0 0.0
    %987 = vmatpush2.msra.mxu0 0.0
    %988 = vmatprep.subr.mxu0 0.0
    %989 = vmatpush2.msra.mxu0 0.0
    %990 = vmatprep.subr.mxu0 0.0
    %991 = vmatpush2.msra.mxu0 0.0
    %992 = vmatprep.subr.mxu0 0.0
    %993 = vmatpush2.msra.mxu0 0.0
    %994 = vmatprep.subr.mxu0 0.0
    %995 = vmatpush2.msra.mxu0 0.0
    %996 = vmatprep.subr.mxu0 0.0
    %997 = vmatpush2.msra.mxu0 0.0
    %998 = vmatprep.subr.mxu0 0.0
    %999 = vmatpush2.msra.mxu0 0.0
    %1000 = vmatprep.subr.mxu0 0.0
    %1001 = vmatpush2.msra.mxu0 0.0
    %1002 = vmatprep.subr.mxu0 0.0
    %1003 = vmatpush2.msra.mxu0 0.0
    %1004 = vmatprep.subr.mxu0 0.0
    %1005 = vmatpush2.msra.mxu0 0.0
    %1006 = vmatprep.subr.mxu0 0.0
    %1007 = vmatpush2.msra.mxu0 0.0
    %1008 = vmatprep.subr.mxu0 0.0
    %1009 = vmatpush2.msra.mxu0 0.0
    %1010 = vmatprep.subr.mxu0 0.0
    %1011 = vmatpush2.msra.mxu0 0.0
    %1012 = vmatprep.subr.mxu0 0.0
    %1013 = vmatpush2.msra.mxu0 0.0
    %1014 = vmatprep.mubr.f32.mxu0 0.0
    %1015 = vmatmul.mubr.f32.gmra.mxu0 %v948
    %v1016 = vpop.f32.mrf.mxu0
    %v1017 = vadd.f32 0.0, %v1016
    %v1018 = vpop.f32.mrf.mxu0
    %1019 = vdwg.mxu0
    %1020 = vrot.lane.b32.xlu0 %v157, 120
    %v1021 = vpop.permute.xlu0 %1020
    %1022 = vrot.lane.b32.xlu0 %v157, 88
    %v1023 = vpop.permute.xlu0 %1022
    %v1024 = vsel %vm175, %v1021, 0
    %v1026 = vsel %vm175, %v1023, 0
    %1028 = vmatprep.subr.mxu0 0.0
    %1029 = vmatpush1.xpose.msra.mxu0 0.0
    %1030 = vmatprep.subr.mxu0 0.0
    %1031 = vmatpush1.xpose.msra.mxu0 0.0
    %1032 = vmatprep.subr.mxu0 0.0
    %1033 = vmatpush1.xpose.msra.mxu0 0.0
    %1034 = vmatprep.subr.mxu0 0.0
    %1035 = vmatpush1.xpose.msra.mxu0 0.0
    %1036 = vmatprep.subr.mxu0 0.0
    %1037 = vmatpush1.xpose.msra.mxu0 0.0
    %1038 = vmatprep.subr.mxu0 0.0
    %1039 = vmatpush1.xpose.msra.mxu0 0.0
    %1040 = vmatprep.subr.mxu0 0.0
    %1041 = vmatpush1.xpose.msra.mxu0 0.0
    %1042 = vmatprep.subr.mxu0 0.0
    %1043 = vmatpush1.xpose.msra.mxu0 0.0
    %1044 = vmatprep.subr.mxu0 0.0
    %1045 = vmatpush1.xpose.msra.mxu0 0.0
    %1046 = vmatprep.subr.mxu0 0.0
    %1047 = vmatpush1.xpose.msra.mxu0 0.0
    %1048 = vmatprep.subr.mxu0 0.0
    %1049 = vmatpush1.xpose.msra.mxu0 0.0
    %1050 = vmatprep.subr.mxu0 0.0
    %1051 = vmatpush1.xpose.msra.mxu0 0.0
    %1052 = vmatprep.subr.mxu0 0.0
    %1053 = vmatpush1.xpose.msra.mxu0 0.0
    %1054 = vmatprep.subr.mxu0 0.0
    %1055 = vmatpush1.xpose.msra.mxu0 0.0
    %1056 = vmatprep.subr.mxu0 0.0
    %1057 = vmatpush1.xpose.msra.mxu0 0.0
    %1058 = vmatprep.subr.mxu0 0.0
    %1059 = vmatpush1.xpose.msra.mxu0 %v1026
    %1060 = vmatprep.subr.mxu0 0.0
    %1061 = vmatpush2.xpose.msra.mxu0 0.0
    %1062 = vmatprep.subr.mxu0 0.0
    %1063 = vmatpush2.xpose.msra.mxu0 0.0
    %1064 = vmatprep.subr.mxu0 0.0
    %1065 = vmatpush2.xpose.msra.mxu0 0.0
    %1066 = vmatprep.subr.mxu0 0.0
    %1067 = vmatpush2.xpose.msra.mxu0 0.0
    %1068 = vmatprep.subr.mxu0 0.0
    %1069 = vmatpush2.xpose.msra.mxu0 0.0
    %1070 = vmatprep.subr.mxu0 0.0
    %1071 = vmatpush2.xpose.msra.mxu0 0.0
    %1072 = vmatprep.subr.mxu0 0.0
    %1073 = vmatpush2.xpose.msra.mxu0 0.0
    %1074 = vmatprep.subr.mxu0 0.0
    %1075 = vmatpush2.xpose.msra.mxu0 0.0
    %1076 = vmatprep.subr.mxu0 0.0
    %1077 = vmatpush2.xpose.msra.mxu0 0.0
    %1078 = vmatprep.subr.mxu0 0.0
    %1079 = vmatpush2.xpose.msra.mxu0 0.0
    %1080 = vmatprep.subr.mxu0 0.0
    %1081 = vmatpush2.xpose.msra.mxu0 0.0
    %1082 = vmatprep.subr.mxu0 0.0
    %1083 = vmatpush2.xpose.msra.mxu0 0.0
    %1084 = vmatprep.subr.mxu0 0.0
    %1085 = vmatpush2.xpose.msra.mxu0 0.0
    %1086 = vmatprep.subr.mxu0 0.0
    %1087 = vmatpush2.xpose.msra.mxu0 0.0
    %1088 = vmatprep.subr.mxu0 0.0
    %1089 = vmatpush2.xpose.msra.mxu0 0.0
    %1090 = vmatprep.subr.mxu0 0.0
    %1091 = vmatpush2.xpose.msra.mxu0 0.0
    %1092 = vmatprep.mubr.f32.mxu0 0.0
    %1093 = vmatmul.mubr.f32.gmra.mxu0 %v1024
    %v1094 = vpop.f32.mrf.mxu0
    %v1095 = vadd.f32 0.0, %v1094
    %v1096 = vpop.f32.mrf.mxu0
    %1097 = vdwg.mxu0
    %v1098 = vsel %vm164, -3.4028235e+38, %v1095
    %v1099 = vsel %vm175, %v1098, -inf
    %1100 = vmax.xlane.f32.xlu0 %v1099
    %v1101 = vpop.xlane.xlu0 %1100
    %v1102 = vsub.f32 %v1098, %v1101
    %v1103 = vmul.f32 %v1102, 1.442695
    %v1104 = vpow.pop %v1103
    %v1105 = vsel %vm175, %v1104, 0.0
    %1106 = vadd.xlane.f32.xlu0 %v1105
    %v1107 = vpop.xlane.xlu0 %1106
    %v1108 = vrcp.pop %v1107
    %v1109 = vmul.f32 %v1104, %v1108
    %1110 = vrot.lane.b32.xlu0 %v157, 56
    %v1111 = vpop.permute.xlu0 %1110
    %v1114 = vsel %vm175, %v1109, 0
    %1116 = vmatprep.subr.mxu0 0.0
    %1117 = vmatpush1.msra.mxu0 0.0
    %1118 = vmatprep.subr.mxu0 0.0
    %1119 = vmatpush1.msra.mxu0 0.0
    %1120 = vmatprep.subr.mxu0 0.0
    %1121 = vmatpush1.msra.mxu0 0.0
    %1122 = vmatprep.subr.mxu0 0.0
    %1123 = vmatpush1.msra.mxu0 0.0
    %1124 = vmatprep.subr.mxu0 0.0
    %1125 = vmatpush1.msra.mxu0 0.0
    %1126 = vmatprep.subr.mxu0 0.0
    %1127 = vmatpush1.msra.mxu0 0.0
    %1128 = vmatprep.subr.mxu0 0.0
    %1129 = vmatpush1.msra.mxu0 0.0
    %1130 = vmatprep.subr.mxu0 0.0
    %1131 = vmatpush1.msra.mxu0 0.0
    %1132 = vmatprep.subr.mxu0 0.0
    %1133 = vmatpush1.msra.mxu0 0.0
    %1134 = vmatprep.subr.mxu0 0.0
    %1135 = vmatpush1.msra.mxu0 0.0
    %1136 = vmatprep.subr.mxu0 0.0
    %1137 = vmatpush1.msra.mxu0 0.0
    %1138 = vmatprep.subr.mxu0 0.0
    %1139 = vmatpush1.msra.mxu0 0.0
    %1140 = vmatprep.subr.mxu0 0.0
    %1141 = vmatpush1.msra.mxu0 0.0
    %1142 = vmatprep.subr.mxu0 0.0
    %1143 = vmatpush1.msra.mxu0 0.0
    %1144 = vmatprep.subr.mxu0 0.0
    %1145 = vmatpush1.msra.mxu0 0.0
    %1146 = vmatprep.subr.mxu0 0.0
    %1147 = vmatpush1.msra.mxu0 %v1111
    %1148 = vmatprep.subr.mxu0 0.0
    %1149 = vmatpush2.msra.mxu0 0.0
    %1150 = vmatprep.subr.mxu0 0.0
    %1151 = vmatpush2.msra.mxu0 0.0
    %1152 = vmatprep.subr.mxu0 0.0
    %1153 = vmatpush2.msra.mxu0 0.0
    %1154 = vmatprep.subr.mxu0 0.0
    %1155 = vmatpush2.msra.mxu0 0.0
    %1156 = vmatprep.subr.mxu0 0.0
    %1157 = vmatpush2.msra.mxu0 0.0
    %1158 = vmatprep.subr.mxu0 0.0
    %1159 = vmatpush2.msra.mxu0 0.0
    %1160 = vmatprep.subr.mxu0 0.0
    %1161 = vmatpush2.msra.mxu0 0.0
    %1162 = vmatprep.subr.mxu0 0.0
    %1163 = vmatpush2.msra.mxu0 0.0
    %1164 = vmatprep.subr.mxu0 0.0
    %1165 = vmatpush2.msra.mxu0 0.0
    %1166 = vmatprep.subr.mxu0 0.0
    %1167 = vmatpush2.msra.mxu0 0.0
    %1168 = vmatprep.subr.mxu0 0.0
    %1169 = vmatpush2.msra.mxu0 0.0
    %1170 = vmatprep.subr.mxu0 0.0
    %1171 = vmatpush2.msra.mxu0 0.0
    %1172 = vmatprep.subr.mxu0 0.0
    %1173 = vmatpush2.msra.mxu0 0.0
    %1174 = vmatprep.subr.mxu0 0.0
    %1175 = vmatpush2.msra.mxu0 0.0
    %1176 = vmatprep.subr.mxu0 0.0
    %1177 = vmatpush2.msra.mxu0 0.0
    %1178 = vmatprep.subr.mxu0 0.0
    %1179 = vmatpush2.msra.mxu0 0.0
    %1180 = vmatprep.mubr.f32.mxu0 0.0
    %1181 = vmatmul.mubr.f32.gmra.mxu0 %v1114
    %v1182 = vpop.f32.mrf.mxu0
    %v1183 = vadd.f32 0.0, %v1182
    %v1184 = vpop.f32.mrf.mxu0
    %1185 = vdwg.mxu0
    %1186 = vrot.lane.b32.xlu0 %v157, 112
    %v1187 = vpop.permute.xlu0 %1186
    %1188 = vrot.lane.b32.xlu0 %v157, 80
    %v1189 = vpop.permute.xlu0 %1188
    %v1190 = vsel %vm175, %v1187, 0
    %v1192 = vsel %vm175, %v1189, 0
    %1194 = vmatprep.subr.mxu0 0.0
    %1195 = vmatpush1.xpose.msra.mxu0 0.0
    %1196 = vmatprep.subr.mxu0 0.0
    %1197 = vmatpush1.xpose.msra.mxu0 0.0
    %1198 = vmatprep.subr.mxu0 0.0
    %1199 = vmatpush1.xpose.msra.mxu0 0.0
    %1200 = vmatprep.subr.mxu0 0.0
    %1201 = vmatpush1.xpose.msra.mxu0 0.0
    %1202 = vmatprep.subr.mxu0 0.0
    %1203 = vmatpush1.xpose.msra.mxu0 0.0
    %1204 = vmatprep.subr.mxu0 0.0
    %1205 = vmatpush1.xpose.msra.mxu0 0.0
    %1206 = vmatprep.subr.mxu0 0.0
    %1207 = vmatpush1.xpose.msra.mxu0 0.0
    %1208 = vmatprep.subr.mxu0 0.0
    %1209 = vmatpush1.xpose.msra.mxu0 0.0
    %1210 = vmatprep.subr.mxu0 0.0
    %1211 = vmatpush1.xpose.msra.mxu0 0.0
    %1212 = vmatprep.subr.mxu0 0.0
    %1213 = vmatpush1.xpose.msra.mxu0 0.0
    %1214 = vmatprep.subr.mxu0 0.0
    %1215 = vmatpush1.xpose.msra.mxu0 0.0
    %1216 = vmatprep.subr.mxu0 0.0
    %1217 = vmatpush1.xpose.msra.mxu0 0.0
    %1218 = vmatprep.subr.mxu0 0.0
    %1219 = vmatpush1.xpose.msra.mxu0 0.0
    %1220 = vmatprep.subr.mxu0 0.0
    %1221 = vmatpush1.xpose.msra.mxu0 0.0
    %1222 = vmatprep.subr.mxu0 0.0
    %1223 = vmatpush1.xpose.msra.mxu0 0.0
    %1224 = vmatprep.subr.mxu0 0.0
    %1225 = vmatpush1.xpose.msra.mxu0 %v1192
    %1226 = vmatprep.subr.mxu0 0.0
    %1227 = vmatpush2.xpose.msra.mxu0 0.0
    %1228 = vmatprep.subr.mxu0 0.0
    %1229 = vmatpush2.xpose.msra.mxu0 0.0
    %1230 = vmatprep.subr.mxu0 0.0
    %1231 = vmatpush2.xpose.msra.mxu0 0.0
    %1232 = vmatprep.subr.mxu0 0.0
    %1233 = vmatpush2.xpose.msra.mxu0 0.0
    %1234 = vmatprep.subr.mxu0 0.0
    %1235 = vmatpush2.xpose.msra.mxu0 0.0
    %1236 = vmatprep.subr.mxu0 0.0
    %1237 = vmatpush2.xpose.msra.mxu0 0.0
    %1238 = vmatprep.subr.mxu0 0.0
    %1239 = vmatpush2.xpose.msra.mxu0 0.0
    %1240 = vmatprep.subr.mxu0 0.0
    %1241 = vmatpush2.xpose.msra.mxu0 0.0
    %1242 = vmatprep.subr.mxu0 0.0
    %1243 = vmatpush2.xpose.msra.mxu0 0.0
    %1244 = vmatprep.subr.mxu0 0.0
    %1245 = vmatpush2.xpose.msra.mxu0 0.0
    %1246 = vmatprep.subr.mxu0 0.0
    %1247 = vmatpush2.xpose.msra.mxu0 0.0
    %1248 = vmatprep.subr.mxu0 0.0
    %1249 = vmatpush2.xpose.msra.mxu0 0.0
    %1250 = vmatprep.subr.mxu0 0.0
    %1251 = vmatpush2.xpose.msra.mxu0 0.0
    %1252 = vmatprep.subr.mxu0 0.0
    %1253 = vmatpush2.xpose.msra.mxu0 0.0
    %1254 = vmatprep.subr.mxu0 0.0
    %1255 = vmatpush2.xpose.msra.mxu0 0.0
    %1256 = vmatprep.subr.mxu0 0.0
    %1257 = vmatpush2.xpose.msra.mxu0 0.0
    %1258 = vmatprep.mubr.f32.mxu0 0.0
    %1259 = vmatmul.mubr.f32.gmra.mxu0 %v1190
    %v1260 = vpop.f32.mrf.mxu0
    %v1261 = vadd.f32 0.0, %v1260
    %v1262 = vpop.f32.mrf.mxu0
    %1263 = vdwg.mxu0
    %v1264 = vsel %vm164, -3.4028235e+38, %v1261
    %v1265 = vsel %vm175, %v1264, -inf
    %1266 = vmax.xlane.f32.xlu0 %v1265
    %v1267 = vpop.xlane.xlu0 %1266
    %v1268 = vsub.f32 %v1264, %v1267
    %v1269 = vmul.f32 %v1268, 1.442695
    %v1270 = vpow.pop %v1269
    %v1271 = vsel %vm175, %v1270, 0.0
    %1272 = vadd.xlane.f32.xlu0 %v1271
    %v1273 = vpop.xlane.xlu0 %1272
    %v1274 = vrcp.pop %v1273
    %v1275 = vmul.f32 %v1270, %v1274
    %1276 = vrot.lane.b32.xlu0 %v157, 48
    %v1277 = vpop.permute.xlu0 %1276
    %v1280 = vsel %vm175, %v1275, 0
    %1282 = vmatprep.subr.mxu0 0.0
    %1283 = vmatpush1.msra.mxu0 0.0
    %1284 = vmatprep.subr.mxu0 0.0
    %1285 = vmatpush1.msra.mxu0 0.0
    %1286 = vmatprep.subr.mxu0 0.0
    %1287 = vmatpush1.msra.mxu0 0.0
    %1288 = vmatprep.subr.mxu0 0.0
    %1289 = vmatpush1.msra.mxu0 0.0
    %1290 = vmatprep.subr.mxu0 0.0
    %1291 = vmatpush1.msra.mxu0 0.0
    %1292 = vmatprep.subr.mxu0 0.0
    %1293 = vmatpush1.msra.mxu0 0.0
    %1294 = vmatprep.subr.mxu0 0.0
    %1295 = vmatpush1.msra.mxu0 0.0
    %1296 = vmatprep.subr.mxu0 0.0
    %1297 = vmatpush1.msra.mxu0 0.0
    %1298 = vmatprep.subr.mxu0 0.0
    %1299 = vmatpush1.msra.mxu0 0.0
    %1300 = vmatprep.subr.mxu0 0.0
    %1301 = vmatpush1.msra.mxu0 0.0
    %1302 = vmatprep.subr.mxu0 0.0
    %1303 = vmatpush1.msra.mxu0 0.0
    %1304 = vmatprep.subr.mxu0 0.0
    %1305 = vmatpush1.msra.mxu0 0.0
    %1306 = vmatprep.subr.mxu0 0.0
    %1307 = vmatpush1.msra.mxu0 0.0
    %1308 = vmatprep.subr.mxu0 0.0
    %1309 = vmatpush1.msra.mxu0 0.0
    %1310 = vmatprep.subr.mxu0 0.0
    %1311 = vmatpush1.msra.mxu0 0.0
    %1312 = vmatprep.subr.mxu0 0.0
    %1313 = vmatpush1.msra.mxu0 %v1277
    %1314 = vmatprep.subr.mxu0 0.0
    %1315 = vmatpush2.msra.mxu0 0.0
    %1316 = vmatprep.subr.mxu0 0.0
    %1317 = vmatpush2.msra.mxu0 0.0
    %1318 = vmatprep.subr.mxu0 0.0
    %1319 = vmatpush2.msra.mxu0 0.0
    %1320 = vmatprep.subr.mxu0 0.0
    %1321 = vmatpush2.msra.mxu0 0.0
    %1322 = vmatprep.subr.mxu0 0.0
    %1323 = vmatpush2.msra.mxu0 0.0
    %1324 = vmatprep.subr.mxu0 0.0
    %1325 = vmatpush2.msra.mxu0 0.0
    %1326 = vmatprep.subr.mxu0 0.0
    %1327 = vmatpush2.msra.mxu0 0.0
    %1328 = vmatprep.subr.mxu0 0.0
    %1329 = vmatpush2.msra.mxu0 0.0
    %1330 = vmatprep.subr.mxu0 0.0
    %1331 = vmatpush2.msra.mxu0 0.0
    %1332 = vmatprep.subr.mxu0 0.0
    %1333 = vmatpush2.msra.mxu0 0.0
    %1334 = vmatprep.subr.mxu0 0.0
    %1335 = vmatpush2.msra.mxu0 0.0
    %1336 = vmatprep.subr.mxu0 0.0
    %1337 = vmatpush2.msra.mxu0 0.0
    %1338 = vmatprep.subr.mxu0 0.0
    %1339 = vmatpush2.msra.mxu0 0.0
    %1340 = vmatprep.subr.mxu0 0.0
    %1341 = vmatpush2.msra.mxu0 0.0
    %1342 = vmatprep.subr.mxu0 0.0
    %1343 = vmatpush2.msra.mxu0 0.0
    %1344 = vmatprep.subr.mxu0 0.0
    %1345 = vmatpush2.msra.mxu0 0.0
    %1346 = vmatprep.mubr.f32.mxu0 0.0
    %1347 = vmatmul.mubr.f32.gmra.mxu0 %v1280
    %v1348 = vpop.f32.mrf.mxu0
    %v1349 = vadd.f32 0.0, %v1348
    %v1350 = vpop.f32.mrf.mxu0
    %1351 = vdwg.mxu0
    %1352 = vrot.lane.b32.xlu0 %v157, 104
    %v1353 = vpop.permute.xlu0 %1352
    %1354 = vrot.lane.b32.xlu0 %v157, 72
    %v1355 = vpop.permute.xlu0 %1354
    %v1356 = vsel %vm175, %v1353, 0
    %v1358 = vsel %vm175, %v1355, 0
    %1360 = vmatprep.subr.mxu0 0.0
    %1361 = vmatpush1.xpose.msra.mxu0 0.0
    %1362 = vmatprep.subr.mxu0 0.0
    %1363 = vmatpush1.xpose.msra.mxu0 0.0
    %1364 = vmatprep.subr.mxu0 0.0
    %1365 = vmatpush1.xpose.msra.mxu0 0.0
    %1366 = vmatprep.subr.mxu0 0.0
    %1367 = vmatpush1.xpose.msra.mxu0 0.0
    %1368 = vmatprep.subr.mxu0 0.0
    %1369 = vmatpush1.xpose.msra.mxu0 0.0
    %1370 = vmatprep.subr.mxu0 0.0
    %1371 = vmatpush1.xpose.msra.mxu0 0.0
    %1372 = vmatprep.subr.mxu0 0.0
    %1373 = vmatpush1.xpose.msra.mxu0 0.0
    %1374 = vmatprep.subr.mxu0 0.0
    %1375 = vmatpush1.xpose.msra.mxu0 0.0
    %1376 = vmatprep.subr.mxu0 0.0
    %1377 = vmatpush1.xpose.msra.mxu0 0.0
    %1378 = vmatprep.subr.mxu0 0.0
    %1379 = vmatpush1.xpose.msra.mxu0 0.0
    %1380 = vmatprep.subr.mxu0 0.0
    %1381 = vmatpush1.xpose.msra.mxu0 0.0
    %1382 = vmatprep.subr.mxu0 0.0
    %1383 = vmatpush1.xpose.msra.mxu0 0.0
    %1384 = vmatprep.subr.mxu0 0.0
    %1385 = vmatpush1.xpose.msra.mxu0 0.0
    %1386 = vmatprep.subr.mxu0 0.0
    %1387 = vmatpush1.xpose.msra.mxu0 0.0
    %1388 = vmatprep.subr.mxu0 0.0
    %1389 = vmatpush1.xpose.msra.mxu0 0.0
    %1390 = vmatprep.subr.mxu0 0.0
    %1391 = vmatpush1.xpose.msra.mxu0 %v1358
    %1392 = vmatprep.subr.mxu0 0.0
    %1393 = vmatpush2.xpose.msra.mxu0 0.0
    %1394 = vmatprep.subr.mxu0 0.0
    %1395 = vmatpush2.xpose.msra.mxu0 0.0
    %1396 = vmatprep.subr.mxu0 0.0
    %1397 = vmatpush2.xpose.msra.mxu0 0.0
    %1398 = vmatprep.subr.mxu0 0.0
    %1399 = vmatpush2.xpose.msra.mxu0 0.0
    %1400 = vmatprep.subr.mxu0 0.0
    %1401 = vmatpush2.xpose.msra.mxu0 0.0
    %1402 = vmatprep.subr.mxu0 0.0
    %1403 = vmatpush2.xpose.msra.mxu0 0.0
    %1404 = vmatprep.subr.mxu0 0.0
    %1405 = vmatpush2.xpose.msra.mxu0 0.0
    %1406 = vmatprep.subr.mxu0 0.0
    %1407 = vmatpush2.xpose.msra.mxu0 0.0
    %1408 = vmatprep.subr.mxu0 0.0
    %1409 = vmatpush2.xpose.msra.mxu0 0.0
    %1410 = vmatprep.subr.mxu0 0.0
    %1411 = vmatpush2.xpose.msra.mxu0 0.0
    %1412 = vmatprep.subr.mxu0 0.0
    %1413 = vmatpush2.xpose.msra.mxu0 0.0
    %1414 = vmatprep.subr.mxu0 0.0
    %1415 = vmatpush2.xpose.msra.mxu0 0.0
    %1416 = vmatprep.subr.mxu0 0.0
    %1417 = vmatpush2.xpose.msra.mxu0 0.0
    %1418 = vmatprep.subr.mxu0 0.0
    %1419 = vmatpush2.xpose.msra.mxu0 0.0
    %1420 = vmatprep.subr.mxu0 0.0
    %1421 = vmatpush2.xpose.msra.mxu0 0.0
    %1422 = vmatprep.subr.mxu0 0.0
    %1423 = vmatpush2.xpose.msra.mxu0 0.0
    %1424 = vmatprep.mubr.f32.mxu0 0.0
    %1425 = vmatmul.mubr.f32.gmra.mxu0 %v1356
    %v1426 = vpop.f32.mrf.mxu0
    %v1427 = vadd.f32 0.0, %v1426
    %v1428 = vpop.f32.mrf.mxu0
    %1429 = vdwg.mxu0
    %v1430 = vsel %vm164, -3.4028235e+38, %v1427
    %v1431 = vsel %vm175, %v1430, -inf
    %1432 = vmax.xlane.f32.xlu0 %v1431
    %v1433 = vpop.xlane.xlu0 %1432
    %v1434 = vsub.f32 %v1430, %v1433
    %v1435 = vmul.f32 %v1434, 1.442695
    %v1436 = vpow.pop %v1435
    %v1437 = vsel %vm175, %v1436, 0.0
    %1438 = vadd.xlane.f32.xlu0 %v1437
    %v1439 = vpop.xlane.xlu0 %1438
    %v1440 = vrcp.pop %v1439
    %v1441 = vmul.f32 %v1436, %v1440
    %1442 = vrot.lane.b32.xlu0 %v157, 40
    %v1443 = vpop.permute.xlu0 %1442
    %v1446 = vsel %vm175, %v1441, 0
    %1448 = vmatprep.subr.mxu0 0.0
    %1449 = vmatpush1.msra.mxu0 0.0
    %1450 = vmatprep.subr.mxu0 0.0
    %1451 = vmatpush1.msra.mxu0 0.0
    %1452 = vmatprep.subr.mxu0 0.0
    %1453 = vmatpush1.msra.mxu0 0.0
    %1454 = vmatprep.subr.mxu0 0.0
    %1455 = vmatpush1.msra.mxu0 0.0
    %1456 = vmatprep.subr.mxu0 0.0
    %1457 = vmatpush1.msra.mxu0 0.0
    %1458 = vmatprep.subr.mxu0 0.0
    %1459 = vmatpush1.msra.mxu0 0.0
    %1460 = vmatprep.subr.mxu0 0.0
    %1461 = vmatpush1.msra.mxu0 0.0
    %1462 = vmatprep.subr.mxu0 0.0
    %1463 = vmatpush1.msra.mxu0 0.0
    %1464 = vmatprep.subr.mxu0 0.0
    %1465 = vmatpush1.msra.mxu0 0.0
    %1466 = vmatprep.subr.mxu0 0.0
    %1467 = vmatpush1.msra.mxu0 0.0
    %1468 = vmatprep.subr.mxu0 0.0
    %1469 = vmatpush1.msra.mxu0 0.0
    %1470 = vmatprep.subr.mxu0 0.0
    %1471 = vmatpush1.msra.mxu0 0.0
    %1472 = vmatprep.subr.mxu0 0.0
    %1473 = vmatpush1.msra.mxu0 0.0
    %1474 = vmatprep.subr.mxu0 0.0
    %1475 = vmatpush1.msra.mxu0 0.0
    %1476 = vmatprep.subr.mxu0 0.0
    %1477 = vmatpush1.msra.mxu0 0.0
    %1478 = vmatprep.subr.mxu0 0.0
    %1479 = vmatpush1.msra.mxu0 %v1443
    %1480 = vmatprep.subr.mxu0 0.0
    %1481 = vmatpush2.msra.mxu0 0.0
    %1482 = vmatprep.subr.mxu0 0.0
    %1483 = vmatpush2.msra.mxu0 0.0
    %1484 = vmatprep.subr.mxu0 0.0
    %1485 = vmatpush2.msra.mxu0 0.0
    %1486 = vmatprep.subr.mxu0 0.0
    %1487 = vmatpush2.msra.mxu0 0.0
    %1488 = vmatprep.subr.mxu0 0.0
    %1489 = vmatpush2.msra.mxu0 0.0
    %1490 = vmatprep.subr.mxu0 0.0
    %1491 = vmatpush2.msra.mxu0 0.0
    %1492 = vmatprep.subr.mxu0 0.0
    %1493 = vmatpush2.msra.mxu0 0.0
    %1494 = vmatprep.subr.mxu0 0.0
    %1495 = vmatpush2.msra.mxu0 0.0
    %1496 = vmatprep.subr.mxu0 0.0
    %1497 = vmatpush2.msra.mxu0 0.0
    %1498 = vmatprep.subr.mxu0 0.0
    %1499 = vmatpush2.msra.mxu0 0.0
    %1500 = vmatprep.subr.mxu0 0.0
    %1501 = vmatpush2.msra.mxu0 0.0
    %1502 = vmatprep.subr.mxu0 0.0
    %1503 = vmatpush2.msra.mxu0 0.0
    %1504 = vmatprep.subr.mxu0 0.0
    %1505 = vmatpush2.msra.mxu0 0.0
    %1506 = vmatprep.subr.mxu0 0.0
    %1507 = vmatpush2.msra.mxu0 0.0
    %1508 = vmatprep.subr.mxu0 0.0
    %1509 = vmatpush2.msra.mxu0 0.0
    %1510 = vmatprep.subr.mxu0 0.0
    %1511 = vmatpush2.msra.mxu0 0.0
    %1512 = vmatprep.mubr.f32.mxu0 0.0
    %1513 = vmatmul.mubr.f32.gmra.mxu0 %v1446
    %v1514 = vpop.f32.mrf.mxu0
    %v1515 = vadd.f32 0.0, %v1514
    %v1516 = vpop.f32.mrf.mxu0
    %1517 = vdwg.mxu0
    %1519 = vrot.lane.b32.xlu0 %v1183, 8
    %v1520 = vpop.permute.xlu0 %1519
    %1523 = vrot.lane.b32.xlu0 %v1349, 16
    %v1524 = vpop.permute.xlu0 %1523
    %1527 = vrot.lane.b32.xlu0 %v1515, 24
    %v1528 = vpop.permute.xlu0 %1527
    %v1530 = vsel %vm175, %v1017, %v1520
    %v1531 = vsel %vm846, %v1530, %v1524
    %v1532 = vsel %vm848, %v1531, %v1528
    %v1533 = vld [vmem:[#allocation7] sm:$0xff]
    %v1534 = vld [vmem:[#allocation7 + $0x8] sm:$0xff]
    %v1535 = vld [vmem:[#allocation7 + $0x10] sm:$0xff]
    %v1536 = vld [vmem:[#allocation7 + $0x18] sm:$0xff]
    %v1537 = vld [vmem:[%s4] sm:$0x1]
    %v1539 = vlaneseq
    %v1540 = vshrl.u32 %v1539, 7
    %v1541 = vsub.s32 0, %v1540
    %v1542 = vrot.slane %v1537, %v1541
    %v1545 = vsel %vm78, %v849, 0
    %v1548 = vsel %vm78, %v1532, 0
    %1550 = vmatprep.subr.mxu0 0.0
    %1551 = vmatpush1.msra.mxu0 0.0
    %1552 = vmatprep.subr.mxu0 0.0
    %1553 = vmatpush1.msra.mxu0 0.0
    %1554 = vmatprep.subr.mxu0 0.0
    %1555 = vmatpush1.msra.mxu0 0.0
    %1556 = vmatprep.subr.mxu0 0.0
    %1557 = vmatpush1.msra.mxu0 0.0
    %1558 = vmatprep.subr.mxu0 0.0
    %1559 = vmatpush1.msra.mxu0 0.0
    %1560 = vmatprep.subr.mxu0 0.0
    %1561 = vmatpush1.msra.mxu0 0.0
    %1562 = vmatprep.subr.mxu0 0.0
    %1563 = vmatpush1.msra.mxu0 0.0
    %1564 = vmatprep.subr.mxu0 0.0
    %1565 = vmatpush1.msra.mxu0 0.0
    %1566 = vmatprep.subr.mxu0 0.0
    %1567 = vmatpush1.msra.mxu0 0.0
    %1568 = vmatprep.subr.mxu0 0.0
    %1569 = vmatpush1.msra.mxu0 0.0
    %1570 = vmatprep.subr.mxu0 0.0
    %1571 = vmatpush1.msra.mxu0 0.0
    %1572 = vmatprep.subr.mxu0 0.0
    %1573 = vmatpush1.msra.mxu0 0.0
    %1574 = vmatprep.subr.mxu0 0.0
    %1575 = vmatpush1.msra.mxu0 %v1536
    %1576 = vmatprep.subr.mxu0 0.0
    %1577 = vmatpush1.msra.mxu0 %v1535
    %1578 = vmatprep.subr.mxu0 0.0
    %1579 = vmatpush1.msra.mxu0 %v1534
    %1580 = vmatprep.subr.mxu0 0.0
    %1581 = vmatpush1.msra.mxu0 %v1533
    %1582 = vmatprep.subr.mxu0 0.0
    %1583 = vmatpush2.msra.mxu0 0.0
    %1584 = vmatprep.subr.mxu0 0.0
    %1585 = vmatpush2.msra.mxu0 0.0
    %1586 = vmatprep.subr.mxu0 0.0
    %1587 = vmatpush2.msra.mxu0 0.0
    %1588 = vmatprep.subr.mxu0 0.0
    %1589 = vmatpush2.msra.mxu0 0.0
    %1590 = vmatprep.subr.mxu0 0.0
    %1591 = vmatpush2.msra.mxu0 0.0
    %1592 = vmatprep.subr.mxu0 0.0
    %1593 = vmatpush2.msra.mxu0 0.0
    %1594 = vmatprep.subr.mxu0 0.0
    %1595 = vmatpush2.msra.mxu0 0.0
    %1596 = vmatprep.subr.mxu0 0.0
    %1597 = vmatpush2.msra.mxu0 0.0
    %1598 = vmatprep.subr.mxu0 0.0
    %1599 = vmatpush2.msra.mxu0 0.0
    %1600 = vmatprep.subr.mxu0 0.0
    %1601 = vmatpush2.msra.mxu0 0.0
    %1602 = vmatprep.subr.mxu0 0.0
    %1603 = vmatpush2.msra.mxu0 0.0
    %1604 = vmatprep.subr.mxu0 0.0
    %1605 = vmatpush2.msra.mxu0 0.0
    %1606 = vmatprep.subr.mxu0 0.0
    %1607 = vmatpush2.msra.mxu0 0.0
    %1608 = vmatprep.subr.mxu0 0.0
    %1609 = vmatpush2.msra.mxu0 0.0
    %1610 = vmatprep.subr.mxu0 0.0
    %1611 = vmatpush2.msra.mxu0 0.0
    %1612 = vmatprep.subr.mxu0 0.0
    %1613 = vmatpush2.msra.mxu0 0.0
    %1614 = vmatprep.mubr.f32.mxu0 0.0
    %1615 = vmatmul.mubr.f32.gmra.mxu0 %v1545
    %v1616 = vpop.f32.mrf.mxu0
    %v1617 = vadd.f32 %v1542, %v1616
    %v1618 = vpop.f32.mrf.mxu0
    %1619 = vmatprep.mubr.f32.mxu0 0.0
    %1620 = vmatmul.mubr.f32.gmra.mxu0 %v1548
    %v1621 = vpop.f32.mrf.mxu0
    %v1622 = vadd.f32 %v1542, %v1621
    %v1623 = vpop.f32.mrf.mxu0
    %1624 = vdwg.mxu0
    %1625 = vst.msk [vmem:[#allocation8] sm:$0xff] %vm78, %v1617
    %1626 = vst.msk [vmem:[#allocation8 + $0x8] sm:$0xff] %vm78, %v1622
    // Predicated region
    $region34: #{tpu_custom_call.1} parent=1 // pred_check
      _
    $region35: #{tpu_custom_call.1} parent=1 // pred_check_branch
      %1628 = sbr.rel (0) target = $region37
    $region36: #{tpu_custom_call.1} parent=1 // pred_region
      %s1630 = ssub.s32 256, 256
      %1631 = vsyncadd [#allocation4], %s1630
      %s1632 = sshll.u32 [#allocation8], 4
      %s1633 = int_to_ptr.vmem [resolvable:$true] %s1632
      %1638 = dma.vmem_to_hbm [thread:$0]  %s1633, 256, %s5, [#allocation4], 128, 128, 8
    $region37: #{tpu_custom_call.1} parent=1 // pred_fallthru
      _
    // Predicated region
    $region38: #{tpu_custom_call.1} parent=1 // pred_check
      _
    $region39: #{tpu_custom_call.1} parent=1 // pred_check_branch
      %1640 = sbr.rel (0) target = $region41
    $region40: #{tpu_custom_call.1} parent=1 // pred_region
      %s1642 = ssub.s32 512, 512
      %1643 = vsyncadd [#allocation10], %s1642
      %s1644 = sshll.u32 [#allocation9], 4
      %s1645 = int_to_ptr.vmem [resolvable:$true] %s1644
      %1650 = dma.vmem_to_hbm [thread:$0]  %s1645, 512, %s6, [#allocation10], 128, 128, 8
    $region41: #{tpu_custom_call.1} parent=1 // pred_fallthru
      _
    // Predicated region
    $region42: #{tpu_custom_call.1} parent=1 // pred_check
      _
    $region43: #{tpu_custom_call.1} parent=1 // pred_check_branch
      %1652 = sbr.rel (0) target = $region45
    $region44: #{tpu_custom_call.1} parent=1 // pred_region
      %1653 = dma.done [#allocation4], 256
    $region45: #{tpu_custom_call.1} parent=1 // pred_fallthru
      _
    // Predicated region
    $region46: #{tpu_custom_call.1} parent=1 // pred_check
      _
    $region47: #{tpu_custom_call.1} parent=1 // pred_check_branch
      %1655 = sbr.rel (0) target = $region49
    $region48: #{tpu_custom_call.1} parent=1 // pred_region
      %1656 = dma.done [#allocation10], 512
    $region49: #{tpu_custom_call.1} parent=1 // pred_fallthru
      _
    %1657 = vsyncpa [#allocation3], 1
    %1658 = vsyncpa [#allocation6], 1
    %1659 = vsyncpa [#allocation4], 1
    %1660 = vsyncpa [#allocation10], 1

</llo_original>
